<compile_context>
chip_gen: v5e
topology: v5e:2x2
jax: 0.10.0
libtpu: 0.0.40
codegen_flags: <defaults>
</compile_context>

<pallas_src>
import numpy as np
import jax
import jax.numpy as jnp
from jax.experimental import pallas as pl
from jax.experimental.pallas import tpu as pltpu


# ----------------------------------------------------------------------------
# Fused kernel: Conv1 + ReLU + Pool1 + Conv2 + ReLU + Pool2 for ONE image.
# ----------------------------------------------------------------------------
def _feature_block_kernel(xp_ref, w1_ref, b1_ref, w2_ref, b2_ref, o_ref):
    # xp_ref : (1, 4, 8, 128) f32  input rows split by (row mod 4); lane = c*32 + w
    # w1_ref : (640, 256) bf16     banded conv1 weights: row = i*128 + c*32 + w,
    #                              col = wpar*128 + pw*6 + co   (conv col ow = 2*pw + wpar)
    # b1_ref : (1, 128) f32        conv1 bias broadcast over pw  (lane = pw*6 + co)
    # w2_ref : (640, 256) bf16     banded conv2 weights: row = i2*128 + b*6 + c,
    #                              col = wpar*128 + pw2*16 + co  (conv col ow2 = 2*pw2 + wpar)
    # b2_ref : (1, 128) f32        conv2 bias broadcast over pw2 (lane = pw2*16 + co)
    # o_ref  : (1, 5, 128) f32     out[ph2, pw2*16 + co]
    w1 = w1_ref[...]
    w2 = w2_ref[...]
    b1 = b1_ref[...]
    b2 = b2_ref[...]

    # ---- Block 1: Conv(3->6, 5x5) as banded GEMM + fused ReLU + 2x2 max-pool ----
    # Four GEMM row-blocks: (conv-row parity q) x (pooled-row parity s); a block's
    # local row u is pooled row ph = 2*u + s, conv row oh = 2*ph + q = 4*u + 2*s + q.
    width_pooled = []
    for q, s in ((0, 0), (0, 1), (1, 0), (1, 1)):
        slabs = []
        for i in range(5):                       # the 5 height taps of the 5x5 kernel
            off = 2 * s + q + i                  # input row needed = 4*u + off
            slabs.append(xp_ref[0, off % 4, off // 4:off // 4 + 7, :])   # (7, 128)
        a = jnp.concatenate(slabs, axis=1).astype(jnp.bfloat16)          # (7, 640)
        y = jnp.dot(a, w1, preferred_element_type=jnp.float32)           # (7, 256)
        width_pooled.append(jnp.maximum(y[:, :128], y[:, 128:]))         # (7, 128)
    # max over conv-row parity completes the 2x2 pool; bias + ReLU applied once.
    z_even = jnp.maximum(jnp.maximum(width_pooled[0], width_pooled[2]) + b1, 0.0)
    z_odd = jnp.maximum(jnp.maximum(width_pooled[1], width_pooled[3]) + b1, 0.0)
    z = (z_even, z_odd)            # z[p][u, pw*6 + c] = y1[c, 2*u + p, pw]

    # ---- Block 2: Conv(6->16, 5x5) as banded GEMM + fused ReLU + 2x2 max-pool ----
    width_pooled2 = []
    for q2 in (0, 1):                            # conv2 output-row parity
        slabs = []
        for i2 in range(5):
            off = q2 + i2                        # y1 row needed = 2*r2 + off
            slabs.append(z[off % 2][off // 2:off // 2 + 5, :])           # (5, 128)
        a2 = jnp.concatenate(slabs, axis=1).astype(jnp.bfloat16)         # (5, 640)
        y2 = jnp.dot(a2, w2, preferred_element_type=jnp.float32)         # (5, 256)
        width_pooled2.append(jnp.maximum(y2[:, :128], y2[:, 128:]))      # (5, 128)
    o_ref[0] = jnp.maximum(
        jnp.maximum(width_pooled2[0], width_pooled2[1]) + b2, 0.0)       # (5, 128)


# ----------------------------------------------------------------------------
# Wrapper-side layout plumbing (tiny, weight/activation preprocessing only)
# ----------------------------------------------------------------------------
def _pack_input(x):
    """(N, 3, 32, 32) -> (N, 4, 8, 128) with xp[n, m, t, c*32+w] = x[n, c, 4*t+m, w]."""
    n = x.shape[0]
    xr = x.reshape(n, 3, 8, 4, 32).transpose(0, 3, 2, 1, 4).reshape(n, 4, 8, 96)
    return jnp.pad(xr, ((0, 0), (0, 0), (0, 0), (0, 32)))


def _banded_conv1_weights(w1):
    """(6, 3, 5, 5) OIHW -> (640, 256) bf16 banded matrix (see kernel docstring)."""
    co, c, i, j, pw, wp = np.meshgrid(np.arange(6), np.arange(3), np.arange(5),
                                      np.arange(5), np.arange(14), np.arange(2),
                                      indexing="ij")
    w = 2 * pw + wp + j                      # input column index (always < 32)
    rows = i * 128 + c * 32 + w
    cols = wp * 128 + pw * 6 + co
    mat = jnp.zeros((640, 256), jnp.float32).at[rows, cols].set(w1[co, c, i, j])
    return mat.astype(jnp.bfloat16)


def _banded_conv2_weights(w2):
    """(16, 6, 5, 5) OIHW -> (640, 256) bf16 banded matrix (see kernel docstring)."""
    co, c, i2, j2, pw2, wp = np.meshgrid(np.arange(16), np.arange(6), np.arange(5),
                                         np.arange(5), np.arange(5), np.arange(2),
                                         indexing="ij")
    b = 2 * pw2 + wp + j2                    # y1 column index (always < 14)
    rows = i2 * 128 + b * 6 + c
    cols = wp * 128 + pw2 * 16 + co
    mat = jnp.zeros((640, 256), jnp.float32).at[rows, cols].set(w2[co, c, i2, j2])
    return mat.astype(jnp.bfloat16)


def feature_block(x, w1, b1, w2, b2):
    """x: (N, 3, 32, 32) f32 NCHW -> (N, 16, 5, 5) f32 NCHW."""
    assert x.shape[1:] == (3, 32, 32), x.shape
    n = x.shape[0]
    xp = _pack_input(x)
    w1m = _banded_conv1_weights(w1)
    w2m = _banded_conv2_weights(w2)
    b1v = jnp.concatenate([jnp.tile(b1, 14), jnp.zeros(44, b1.dtype)]).reshape(1, 128)
    b2v = jnp.concatenate([jnp.tile(b2, 5), jnp.zeros(48, b2.dtype)]).reshape(1, 128)

    out = pl.pallas_call(
        _feature_block_kernel,
        out_shape=jax.ShapeDtypeStruct((n, 5, 128), jnp.float32),
        grid=(n,),
        in_specs=[
            pl.BlockSpec((1, 4, 8, 128), lambda b: (b, 0, 0, 0)),
            pl.BlockSpec((640, 256), lambda b: (0, 0)),
            pl.BlockSpec((1, 128), lambda b: (0, 0)),
            pl.BlockSpec((640, 256), lambda b: (0, 0)),
            pl.BlockSpec((1, 128), lambda b: (0, 0)),
        ],
        out_specs=pl.BlockSpec((1, 5, 128), lambda b: (b, 0, 0)),
        compiler_params=pltpu.CompilerParams(dimension_semantics=("parallel",)),
    )(xp, w1m, b1v, w2m, b2v)

    # (N, 5, 128) -> (N, 5, 5, 16) -> (N, 16, 5, 5): pure layout plumbing.
    return out[:, :, :80].reshape(n, 5, 5, 16).transpose(0, 3, 1, 2)


# ----------------------------------------------------------------------------
# Pure-JAX reference (for correctness check)
# ----------------------------------------------------------------------------
def reference(x, w1, b1, w2, b2):
    dn = ("NCHW", "OIHW", "NCHW")

    def conv_relu_pool_ref(h, w, b):
        h = jax.lax.conv_general_dilated(h, w, (1, 1), "VALID", dimension_numbers=dn)
        h = jnp.maximum(h + b.reshape(1, -1, 1, 1), 0.0)
        return jax.lax.reduce_window(h, -jnp.inf, jax.lax.max,
                                     (1, 1, 2, 2), (1, 1, 2, 2), "VALID")

    return conv_relu_pool_ref(conv_relu_pool_ref(x, w1, b1), w2, b2)


if __name__ == "__main__":
    key = jax.random.PRNGKey(0)
    kx, k1, k2, k3, k4 = jax.random.split(key, 5)

    x = jax.random.normal(kx, (2, 3, 32, 32), dtype=jnp.float32)

    fan1 = 3 * 5 * 5
    fan2 = 6 * 5 * 5
    w1 = jax.random.uniform(k1, (6, 3, 5, 5), jnp.float32, -fan1 ** -0.5, fan1 ** -0.5)
    b1 = jax.random.uniform(k2, (6,), jnp.float32, -fan1 ** -0.5, fan1 ** -0.5)
    w2 = jax.random.uniform(k3, (16, 6, 5, 5), jnp.float32, -fan2 ** -0.5, fan2 ** -0.5)
    b2 = jax.random.uniform(k4, (16,), jnp.float32, -fan2 ** -0.5, fan2 ** -0.5)

    out = jax.block_until_ready(jax.jit(feature_block)(x, w1, b1, w2, b2))
    ref = jax.block_until_ready(reference(x, w1, b1, w2, b2))

    assert out.shape == (2, 16, 5, 5), out.shape
    err = float(jnp.max(jnp.abs(out - ref)))
    # bf16 GEMM operands (f32 accumulation) => small rounding vs the f32 reference.
    assert err < 2e-2, err
    print("KERNEL_OK")
</pallas_src>

<mosaic_0001>
module attributes {stable_mosaic.version = 11 : i64} {
  func.func @_feature_block_kernel(%arg0: i32, %arg1: memref<1x4x8x128xf32, #tpu.memory_space<vmem>>, %arg2: memref<640x256xbf16, #tpu.memory_space<vmem>>, %arg3: memref<1x128xf32, #tpu.memory_space<vmem>>, %arg4: memref<640x256xbf16, #tpu.memory_space<vmem>>, %arg5: memref<1x128xf32, #tpu.memory_space<vmem>>, %arg6: memref<1x5x128xf32, #tpu.memory_space<vmem>>) attributes {dimension_semantics = [#tpu.dimension_semantics<parallel>], iteration_bounds = array<i64: 2>, scalar_prefetch = 0 : i64, scratch_operands = 0 : i64, tpu.core_type = #tpu.core_type<tc>, window_params = [{transform_indices = @transform_0, window_bounds = array<i64: 1, 4, 8, 128>}, {pipeline_mode = #tpu.pipeline_mode<synchronous>, transform_indices = @transform_1, window_bounds = array<i64: 640, 256>}, {pipeline_mode = #tpu.pipeline_mode<synchronous>, transform_indices = @transform_2, window_bounds = array<i64: 1, 128>}, {pipeline_mode = #tpu.pipeline_mode<synchronous>, transform_indices = @transform_3, window_bounds = array<i64: 640, 256>}, {pipeline_mode = #tpu.pipeline_mode<synchronous>, transform_indices = @transform_4, window_bounds = array<i64: 1, 128>}, {transform_indices = @transform_5, window_bounds = array<i64: 1, 5, 128>}]} {
    %c0 = arith.constant 0 : index
    %c0_0 = arith.constant 0 : index
    %0 = vector.load %arg2[%c0, %c0_0] : memref<640x256xbf16, #tpu.memory_space<vmem>>, vector<640x256xbf16>
    %c0_1 = arith.constant 0 : index
    %c0_2 = arith.constant 0 : index
    %1 = vector.load %arg4[%c0_1, %c0_2] : memref<640x256xbf16, #tpu.memory_space<vmem>>, vector<640x256xbf16>
    %c0_3 = arith.constant 0 : index
    %c0_4 = arith.constant 0 : index
    %2 = vector.load %arg3[%c0_3, %c0_4] : memref<1x128xf32, #tpu.memory_space<vmem>>, vector<1x128xf32>
    %c0_5 = arith.constant 0 : index
    %c0_6 = arith.constant 0 : index
    %3 = vector.load %arg5[%c0_5, %c0_6] : memref<1x128xf32, #tpu.memory_space<vmem>>, vector<1x128xf32>
    %c0_7 = arith.constant 0 : index
    %c0_8 = arith.constant 0 : index
    %c0_9 = arith.constant 0 : index
    %c0_10 = arith.constant 0 : index
    %4 = vector.load %arg1[%c0_7, %c0_8, %c0_9, %c0_10] : memref<1x4x8x128xf32, #tpu.memory_space<vmem>>, vector<1x1x7x128xf32>
    %5 = vector.shape_cast %4 : vector<1x1x7x128xf32> to vector<7x128xf32>
    %c0_11 = arith.constant 0 : index
    %c1 = arith.constant 1 : index
    %c0_12 = arith.constant 0 : index
    %c0_13 = arith.constant 0 : index
    %6 = vector.load %arg1[%c0_11, %c1, %c0_12, %c0_13] : memref<1x4x8x128xf32, #tpu.memory_space<vmem>>, vector<1x1x7x128xf32>
    %7 = vector.shape_cast %6 : vector<1x1x7x128xf32> to vector<7x128xf32>
    %c0_14 = arith.constant 0 : index
    %c2 = arith.constant 2 : index
    %c0_15 = arith.constant 0 : index
    %c0_16 = arith.constant 0 : index
    %8 = vector.load %arg1[%c0_14, %c2, %c0_15, %c0_16] : memref<1x4x8x128xf32, #tpu.memory_space<vmem>>, vector<1x1x7x128xf32>
    %9 = vector.shape_cast %8 : vector<1x1x7x128xf32> to vector<7x128xf32>
    %c0_17 = arith.constant 0 : index
    %c3 = arith.constant 3 : index
    %c0_18 = arith.constant 0 : index
    %c0_19 = arith.constant 0 : index
    %10 = vector.load %arg1[%c0_17, %c3, %c0_18, %c0_19] : memref<1x4x8x128xf32, #tpu.memory_space<vmem>>, vector<1x1x7x128xf32>
    %11 = vector.shape_cast %10 : vector<1x1x7x128xf32> to vector<7x128xf32>
    %c0_20 = arith.constant 0 : index
    %c0_21 = arith.constant 0 : index
    %c1_22 = arith.constant 1 : index
    %c0_23 = arith.constant 0 : index
    %12 = vector.load %arg1[%c0_20, %c0_21, %c1_22, %c0_23] : memref<1x4x8x128xf32, #tpu.memory_space<vmem>>, vector<1x1x7x128xf32>
    %13 = vector.shape_cast %12 : vector<1x1x7x128xf32> to vector<7x128xf32>
    %14 = tpu.concatenate %5, %7, %9, %11, %13 in 1 : vector<7x128xf32>, vector<7x128xf32>, vector<7x128xf32>, vector<7x128xf32>, vector<7x128xf32> -> vector<7x640xf32>
    %15 = arith.truncf %14 : vector<7x640xf32> to vector<7x640xbf16>
    %cst = arith.constant dense<0.000000e+00> : vector<7x256xf32>
    %16 = tpu.matmul %15, %0, %cst {dimension_numbers = #tpu.dot_dimension_numbers<[1], [0], [0], [1], [0, 0, 1, 1], [], []>} : vector<7x640xbf16>, vector<640x256xbf16>, vector<7x256xf32> -> vector<7x256xf32>
    %17 = vector.extract_strided_slice %16 {offsets = [0, 0], sizes = [7, 128], strides = [1, 1]} : vector<7x256xf32> to vector<7x128xf32>
    %18 = vector.extract_strided_slice %16 {offsets = [0, 128], sizes = [7, 128], strides = [1, 1]} : vector<7x256xf32> to vector<7x128xf32>
    %19 = arith.maximumf %17, %18 : vector<7x128xf32>
    %c0_24 = arith.constant 0 : index
    %c2_25 = arith.constant 2 : index
    %c0_26 = arith.constant 0 : index
    %c0_27 = arith.constant 0 : index
    %20 = vector.load %arg1[%c0_24, %c2_25, %c0_26, %c0_27] : memref<1x4x8x128xf32, #tpu.memory_space<vmem>>, vector<1x1x7x128xf32>
    %21 = vector.shape_cast %20 : vector<1x1x7x128xf32> to vector<7x128xf32>
    %c0_28 = arith.constant 0 : index
    %c3_29 = arith.constant 3 : index
    %c0_30 = arith.constant 0 : index
    %c0_31 = arith.constant 0 : index
    %22 = vector.load %arg1[%c0_28, %c3_29, %c0_30, %c0_31] : memref<1x4x8x128xf32, #tpu.memory_space<vmem>>, vector<1x1x7x128xf32>
    %23 = vector.shape_cast %22 : vector<1x1x7x128xf32> to vector<7x128xf32>
    %c0_32 = arith.constant 0 : index
    %c0_33 = arith.constant 0 : index
    %c1_34 = arith.constant 1 : index
    %c0_35 = arith.constant 0 : index
    %24 = vector.load %arg1[%c0_32, %c0_33, %c1_34, %c0_35] : memref<1x4x8x128xf32, #tpu.memory_space<vmem>>, vector<1x1x7x128xf32>
    %25 = vector.shape_cast %24 : vector<1x1x7x128xf32> to vector<7x128xf32>
    %c0_36 = arith.constant 0 : index
    %c1_37 = arith.constant 1 : index
    %c1_38 = arith.constant 1 : index
    %c0_39 = arith.constant 0 : index
    %26 = vector.load %arg1[%c0_36, %c1_37, %c1_38, %c0_39] : memref<1x4x8x128xf32, #tpu.memory_space<vmem>>, vector<1x1x7x128xf32>
    %27 = vector.shape_cast %26 : vector<1x1x7x128xf32> to vector<7x128xf32>
    %c0_40 = arith.constant 0 : index
    %c2_41 = arith.constant 2 : index
    %c1_42 = arith.constant 1 : index
    %c0_43 = arith.constant 0 : index
    %28 = vector.load %arg1[%c0_40, %c2_41, %c1_42, %c0_43] : memref<1x4x8x128xf32, #tpu.memory_space<vmem>>, vector<1x1x7x128xf32>
    %29 = vector.shape_cast %28 : vector<1x1x7x128xf32> to vector<7x128xf32>
    %30 = tpu.concatenate %21, %23, %25, %27, %29 in 1 : vector<7x128xf32>, vector<7x128xf32>, vector<7x128xf32>, vector<7x128xf32>, vector<7x128xf32> -> vector<7x640xf32>
    %31 = arith.truncf %30 : vector<7x640xf32> to vector<7x640xbf16>
    %cst_44 = arith.constant dense<0.000000e+00> : vector<7x256xf32>
    %32 = tpu.matmul %31, %0, %cst_44 {dimension_numbers = #tpu.dot_dimension_numbers<[1], [0], [0], [1], [0, 0, 1, 1], [], []>} : vector<7x640xbf16>, vector<640x256xbf16>, vector<7x256xf32> -> vector<7x256xf32>
    %33 = vector.extract_strided_slice %32 {offsets = [0, 0], sizes = [7, 128], strides = [1, 1]} : vector<7x256xf32> to vector<7x128xf32>
    %34 = vector.extract_strided_slice %32 {offsets = [0, 128], sizes = [7, 128], strides = [1, 1]} : vector<7x256xf32> to vector<7x128xf32>
    %35 = arith.maximumf %33, %34 : vector<7x128xf32>
    %c0_45 = arith.constant 0 : index
    %c1_46 = arith.constant 1 : index
    %c0_47 = arith.constant 0 : index
    %c0_48 = arith.constant 0 : index
    %36 = vector.load %arg1[%c0_45, %c1_46, %c0_47, %c0_48] : memref<1x4x8x128xf32, #tpu.memory_space<vmem>>, vector<1x1x7x128xf32>
    %37 = vector.shape_cast %36 : vector<1x1x7x128xf32> to vector<7x128xf32>
    %c0_49 = arith.constant 0 : index
    %c2_50 = arith.constant 2 : index
    %c0_51 = arith.constant 0 : index
    %c0_52 = arith.constant 0 : index
    %38 = vector.load %arg1[%c0_49, %c2_50, %c0_51, %c0_52] : memref<1x4x8x128xf32, #tpu.memory_space<vmem>>, vector<1x1x7x128xf32>
    %39 = vector.shape_cast %38 : vector<1x1x7x128xf32> to vector<7x128xf32>
    %c0_53 = arith.constant 0 : index
    %c3_54 = arith.constant 3 : index
    %c0_55 = arith.constant 0 : index
    %c0_56 = arith.constant 0 : index
    %40 = vector.load %arg1[%c0_53, %c3_54, %c0_55, %c0_56] : memref<1x4x8x128xf32, #tpu.memory_space<vmem>>, vector<1x1x7x128xf32>
    %41 = vector.shape_cast %40 : vector<1x1x7x128xf32> to vector<7x128xf32>
    %c0_57 = arith.constant 0 : index
    %c0_58 = arith.constant 0 : index
    %c1_59 = arith.constant 1 : index
    %c0_60 = arith.constant 0 : index
    %42 = vector.load %arg1[%c0_57, %c0_58, %c1_59, %c0_60] : memref<1x4x8x128xf32, #tpu.memory_space<vmem>>, vector<1x1x7x128xf32>
    %43 = vector.shape_cast %42 : vector<1x1x7x128xf32> to vector<7x128xf32>
    %c0_61 = arith.constant 0 : index
    %c1_62 = arith.constant 1 : index
    %c1_63 = arith.constant 1 : index
    %c0_64 = arith.constant 0 : index
    %44 = vector.load %arg1[%c0_61, %c1_62, %c1_63, %c0_64] : memref<1x4x8x128xf32, #tpu.memory_space<vmem>>, vector<1x1x7x128xf32>
    %45 = vector.shape_cast %44 : vector<1x1x7x128xf32> to vector<7x128xf32>
    %46 = tpu.concatenate %37, %39, %41, %43, %45 in 1 : vector<7x128xf32>, vector<7x128xf32>, vector<7x128xf32>, vector<7x128xf32>, vector<7x128xf32> -> vector<7x640xf32>
    %47 = arith.truncf %46 : vector<7x640xf32> to vector<7x640xbf16>
    %cst_65 = arith.constant dense<0.000000e+00> : vector<7x256xf32>
    %48 = tpu.matmul %47, %0, %cst_65 {dimension_numbers = #tpu.dot_dimension_numbers<[1], [0], [0], [1], [0, 0, 1, 1], [], []>} : vector<7x640xbf16>, vector<640x256xbf16>, vector<7x256xf32> -> vector<7x256xf32>
    %49 = vector.extract_strided_slice %48 {offsets = [0, 0], sizes = [7, 128], strides = [1, 1]} : vector<7x256xf32> to vector<7x128xf32>
    %50 = vector.extract_strided_slice %48 {offsets = [0, 128], sizes = [7, 128], strides = [1, 1]} : vector<7x256xf32> to vector<7x128xf32>
    %51 = arith.maximumf %49, %50 : vector<7x128xf32>
    %c0_66 = arith.constant 0 : index
    %c3_67 = arith.constant 3 : index
    %c0_68 = arith.constant 0 : index
    %c0_69 = arith.constant 0 : index
    %52 = vector.load %arg1[%c0_66, %c3_67, %c0_68, %c0_69] : memref<1x4x8x128xf32, #tpu.memory_space<vmem>>, vector<1x1x7x128xf32>
    %53 = vector.shape_cast %52 : vector<1x1x7x128xf32> to vector<7x128xf32>
    %c0_70 = arith.constant 0 : index
    %c0_71 = arith.constant 0 : index
    %c1_72 = arith.constant 1 : index
    %c0_73 = arith.constant 0 : index
    %54 = vector.load %arg1[%c0_70, %c0_71, %c1_72, %c0_73] : memref<1x4x8x128xf32, #tpu.memory_space<vmem>>, vector<1x1x7x128xf32>
    %55 = vector.shape_cast %54 : vector<1x1x7x128xf32> to vector<7x128xf32>
    %c0_74 = arith.constant 0 : index
    %c1_75 = arith.constant 1 : index
    %c1_76 = arith.constant 1 : index
    %c0_77 = arith.constant 0 : index
    %56 = vector.load %arg1[%c0_74, %c1_75, %c1_76, %c0_77] : memref<1x4x8x128xf32, #tpu.memory_space<vmem>>, vector<1x1x7x128xf32>
    %57 = vector.shape_cast %56 : vector<1x1x7x128xf32> to vector<7x128xf32>
    %c0_78 = arith.constant 0 : index
    %c2_79 = arith.constant 2 : index
    %c1_80 = arith.constant 1 : index
    %c0_81 = arith.constant 0 : index
    %58 = vector.load %arg1[%c0_78, %c2_79, %c1_80, %c0_81] : memref<1x4x8x128xf32, #tpu.memory_space<vmem>>, vector<1x1x7x128xf32>
    %59 = vector.shape_cast %58 : vector<1x1x7x128xf32> to vector<7x128xf32>
    %c0_82 = arith.constant 0 : index
    %c3_83 = arith.constant 3 : index
    %c1_84 = arith.constant 1 : index
    %c0_85 = arith.constant 0 : index
    %60 = vector.load %arg1[%c0_82, %c3_83, %c1_84, %c0_85] : memref<1x4x8x128xf32, #tpu.memory_space<vmem>>, vector<1x1x7x128xf32>
    %61 = vector.shape_cast %60 : vector<1x1x7x128xf32> to vector<7x128xf32>
    %62 = tpu.concatenate %53, %55, %57, %59, %61 in 1 : vector<7x128xf32>, vector<7x128xf32>, vector<7x128xf32>, vector<7x128xf32>, vector<7x128xf32> -> vector<7x640xf32>
    %63 = arith.truncf %62 : vector<7x640xf32> to vector<7x640xbf16>
    %cst_86 = arith.constant dense<0.000000e+00> : vector<7x256xf32>
    %64 = tpu.matmul %63, %0, %cst_86 {dimension_numbers = #tpu.dot_dimension_numbers<[1], [0], [0], [1], [0, 0, 1, 1], [], []>} : vector<7x640xbf16>, vector<640x256xbf16>, vector<7x256xf32> -> vector<7x256xf32>
    %65 = vector.extract_strided_slice %64 {offsets = [0, 0], sizes = [7, 128], strides = [1, 1]} : vector<7x256xf32> to vector<7x128xf32>
    %66 = vector.extract_strided_slice %64 {offsets = [0, 128], sizes = [7, 128], strides = [1, 1]} : vector<7x256xf32> to vector<7x128xf32>
    %67 = arith.maximumf %65, %66 : vector<7x128xf32>
    %68 = arith.maximumf %19, %51 : vector<7x128xf32>
    %69 = vector.broadcast %2 : vector<1x128xf32> to vector<7x128xf32>
    %70 = arith.addf %68, %69 : vector<7x128xf32>
    %cst_87 = arith.constant 0.000000e+00 : f32
    %71 = vector.broadcast %cst_87 : f32 to vector<7x128xf32>
    %72 = arith.maximumf %70, %71 : vector<7x128xf32>
    %73 = arith.maximumf %35, %67 : vector<7x128xf32>
    %74 = vector.broadcast %2 : vector<1x128xf32> to vector<7x128xf32>
    %75 = arith.addf %73, %74 : vector<7x128xf32>
    %cst_88 = arith.constant 0.000000e+00 : f32
    %76 = vector.broadcast %cst_88 : f32 to vector<7x128xf32>
    %77 = arith.maximumf %75, %76 : vector<7x128xf32>
    %78 = vector.extract_strided_slice %72 {offsets = [0, 0], sizes = [5, 128], strides = [1, 1]} : vector<7x128xf32> to vector<5x128xf32>
    %79 = vector.extract_strided_slice %77 {offsets = [0, 0], sizes = [5, 128], strides = [1, 1]} : vector<7x128xf32> to vector<5x128xf32>
    %80 = vector.extract_strided_slice %72 {offsets = [1, 0], sizes = [5, 128], strides = [1, 1]} : vector<7x128xf32> to vector<5x128xf32>
    %81 = vector.extract_strided_slice %77 {offsets = [1, 0], sizes = [5, 128], strides = [1, 1]} : vector<7x128xf32> to vector<5x128xf32>
    %82 = vector.extract_strided_slice %72 {offsets = [2, 0], sizes = [5, 128], strides = [1, 1]} : vector<7x128xf32> to vector<5x128xf32>
    %83 = tpu.concatenate %78, %79, %80, %81, %82 in 1 : vector<5x128xf32>, vector<5x128xf32>, vector<5x128xf32>, vector<5x128xf32>, vector<5x128xf32> -> vector<5x640xf32>
    %84 = arith.truncf %83 : vector<5x640xf32> to vector<5x640xbf16>
    %cst_89 = arith.constant dense<0.000000e+00> : vector<5x256xf32>
    %85 = tpu.matmul %84, %1, %cst_89 {dimension_numbers = #tpu.dot_dimension_numbers<[1], [0], [0], [1], [0, 0, 1, 1], [], []>} : vector<5x640xbf16>, vector<640x256xbf16>, vector<5x256xf32> -> vector<5x256xf32>
    %86 = vector.extract_strided_slice %85 {offsets = [0, 0], sizes = [5, 128], strides = [1, 1]} : vector<5x256xf32> to vector<5x128xf32>
    %87 = vector.extract_strided_slice %85 {offsets = [0, 128], sizes = [5, 128], strides = [1, 1]} : vector<5x256xf32> to vector<5x128xf32>
    %88 = arith.maximumf %86, %87 : vector<5x128xf32>
    %89 = vector.extract_strided_slice %77 {offsets = [0, 0], sizes = [5, 128], strides = [1, 1]} : vector<7x128xf32> to vector<5x128xf32>
    %90 = vector.extract_strided_slice %72 {offsets = [1, 0], sizes = [5, 128], strides = [1, 1]} : vector<7x128xf32> to vector<5x128xf32>
    %91 = vector.extract_strided_slice %77 {offsets = [1, 0], sizes = [5, 128], strides = [1, 1]} : vector<7x128xf32> to vector<5x128xf32>
    %92 = vector.extract_strided_slice %72 {offsets = [2, 0], sizes = [5, 128], strides = [1, 1]} : vector<7x128xf32> to vector<5x128xf32>
    %93 = vector.extract_strided_slice %77 {offsets = [2, 0], sizes = [5, 128], strides = [1, 1]} : vector<7x128xf32> to vector<5x128xf32>
    %94 = tpu.concatenate %89, %90, %91, %92, %93 in 1 : vector<5x128xf32>, vector<5x128xf32>, vector<5x128xf32>, vector<5x128xf32>, vector<5x128xf32> -> vector<5x640xf32>
    %95 = arith.truncf %94 : vector<5x640xf32> to vector<5x640xbf16>
    %cst_90 = arith.constant dense<0.000000e+00> : vector<5x256xf32>
    %96 = tpu.matmul %95, %1, %cst_90 {dimension_numbers = #tpu.dot_dimension_numbers<[1], [0], [0], [1], [0, 0, 1, 1], [], []>} : vector<5x640xbf16>, vector<640x256xbf16>, vector<5x256xf32> -> vector<5x256xf32>
    %97 = vector.extract_strided_slice %96 {offsets = [0, 0], sizes = [5, 128], strides = [1, 1]} : vector<5x256xf32> to vector<5x128xf32>
    %98 = vector.extract_strided_slice %96 {offsets = [0, 128], sizes = [5, 128], strides = [1, 1]} : vector<5x256xf32> to vector<5x128xf32>
    %99 = arith.maximumf %97, %98 : vector<5x128xf32>
    %100 = arith.maximumf %88, %99 : vector<5x128xf32>
    %101 = vector.broadcast %3 : vector<1x128xf32> to vector<5x128xf32>
    %102 = arith.addf %100, %101 : vector<5x128xf32>
    %cst_91 = arith.constant 0.000000e+00 : f32
    %103 = vector.broadcast %cst_91 : f32 to vector<5x128xf32>
    %104 = arith.maximumf %102, %103 : vector<5x128xf32>
    %c0_92 = arith.constant 0 : index
    %c0_93 = arith.constant 0 : index
    %c0_94 = arith.constant 0 : index
    %105 = vector.load %arg6[%c0_92, %c0_93, %c0_94] : memref<1x5x128xf32, #tpu.memory_space<vmem>>, vector<1x5x128xf32>
    %106 = vector.shape_cast %105 : vector<1x5x128xf32> to vector<5x128xf32>
    %107 = vector.shape_cast %104 : vector<5x128xf32> to vector<1x5x128xf32>
    tpu.vector_store %arg6[%c0_92, %c0_93, %c0_94], %107 {strides = array<i32>} : memref<1x5x128xf32, #tpu.memory_space<vmem>>, vector<1x5x128xf32>,
    return
  }
  func.func @transform_0(%arg0: i32) -> (i32, i32, i32, i32) {
    %c0_i32 = arith.constant 0 : i32
    %c0_i32_0 = arith.constant 0 : i32
    %c0_i32_1 = arith.constant 0 : i32
    %c0_i32_2 = arith.constant 0 : i32
    return %arg0, %c0_i32, %c0_i32_0, %c0_i32_1 : i32, i32, i32, i32
  }
  func.func @transform_1(%arg0: i32) -> (i32, i32) {
    %c0_i32 = arith.constant 0 : i32
    %c0_i32_0 = arith.constant 0 : i32
    %c0_i32_1 = arith.constant 0 : i32
    return %c0_i32, %c0_i32_0 : i32, i32
  }
  func.func @transform_2(%arg0: i32) -> (i32, i32) {
    %c0_i32 = arith.constant 0 : i32
    %c0_i32_0 = arith.constant 0 : i32
    %c0_i32_1 = arith.constant 0 : i32
    return %c0_i32, %c0_i32_0 : i32, i32
  }
  func.func @transform_3(%arg0: i32) -> (i32, i32) {
    %c0_i32 = arith.constant 0 : i32
    %c0_i32_0 = arith.constant 0 : i32
    %c0_i32_1 = arith.constant 0 : i32
    return %c0_i32, %c0_i32_0 : i32, i32
  }
  func.func @transform_4(%arg0: i32) -> (i32, i32) {
    %c0_i32 = arith.constant 0 : i32
    %c0_i32_0 = arith.constant 0 : i32
    %c0_i32_1 = arith.constant 0 : i32
    return %c0_i32, %c0_i32_0 : i32, i32
  }
  func.func @transform_5(%arg0: i32) -> (i32, i32, i32) {
    %c0_i32 = arith.constant 0 : i32
    %c0_i32_0 = arith.constant 0 : i32
    %c0_i32_1 = arith.constant 0 : i32
    return %arg0, %c0_i32, %c0_i32_0 : i32, i32, i32
  }
}

</mosaic_0001>

<llo_original>
// kernel: tile.13
$region0: #{tile.13}
  #allocation0 [shape = 's32[1]{0}', space=sflag, size = 0x4, scoped, tag = 'scoped memory for tile.13']
  %s0 = inlined_call_operand.vmem [shape: f32[6], index: 0, kind: input, shape index: {}]
  %s1 = inlined_call_operand.vmem [shape: f32[14,6], index: 1, kind: output, shape index: {}]
  // Predicated region
  $region2: #{tile.13} parent=0 // pred_check
    _
  $region3: #{tile.13} parent=0 // pred_check_branch
    %3 = sbr.rel (0) target = $region5
  $region4: #{tile.13} parent=0 // pred_region
    _
  $region5: #{tile.13} parent=0 // pred_fallthru
    _
  %v4 = vld [vmem:[%s0] ss:$0 sm:$0xff]
  %5 = vst [vmem:[%s1] sm:$0xff] %v4
  %s6 = scalar_lea.vmem %s1, 8
  %7 = vst [vmem:[%s6] sm:$0xff] %v4

// kernel: tile.14
$region0: #{tile.14}
  %s0 = inlined_call_operand.vmem [shape: f32[14,6], index: 0, kind: input, shape index: {}]
  %s1 = inlined_call_operand.vmem [shape: f32[84], index: 1, kind: output, shape index: {}]
  $region1: #{tile.14} parent=0
    #allocation0 [shape = 'u8[4096]{0}', space=vmem, size = 0x1000, scoped, tag = 'scoped mem for output reshape']
    %v2 = vld [vmem:[%s0] sm:$0x1]
    %vm3 = vcmask 48128
    %4 = vst.msk [vmem:[#allocation0] sm:$0x1] %vm3, %v2
    %s5 = scalar_lea.vmem %s0, 13
    %v6 = vld [vmem:[%s5] sm:$0x1]
    %7 = vrot.lane.b32.xlu0 %v6, 78
    %v8 = vpop.permute.xlu0 %7
    %vm9 = vcmask 687728
    %10 = vst.msk [vmem:[#allocation0] sm:$0x1] %vm9, %v8
    %s11 = scalar_lea.vmem %s0, 12
    %v12 = vld [vmem:[%s11] sm:$0x1]
    %13 = vrot.lane.b32.xlu0 %v12, 72
    %v14 = vpop.permute.xlu0 %13
    %vm15 = vcmask 638528
    %16 = vst.msk [vmem:[#allocation0] sm:$0x1] %vm15, %v14
    %s17 = scalar_lea.vmem %s0, 11
    %v18 = vld [vmem:[%s17] sm:$0x1]
    %19 = vrot.lane.b32.xlu0 %v18, 66
    %v20 = vpop.permute.xlu0 %19
    %vm21 = vcmask 589328
    %22 = vst.msk [vmem:[#allocation0] sm:$0x1] %vm21, %v20
    %s23 = scalar_lea.vmem %s0, 10
    %v24 = vld [vmem:[%s23] sm:$0x1]
    %25 = vrot.lane.b32.xlu0 %v24, 60
    %v26 = vpop.permute.xlu0 %25
    %vm27 = vcmask 540128
    %28 = vst.msk [vmem:[#allocation0] sm:$0x1] %vm27, %v26
    %s29 = scalar_lea.vmem %s0, 9
    %v30 = vld [vmem:[%s29] sm:$0x1]
    %31 = vrot.lane.b32.xlu0 %v30, 54
    %v32 = vpop.permute.xlu0 %31
    %vm33 = vcmask 490928
    %34 = vst.msk [vmem:[#allocation0] sm:$0x1] %vm33, %v32
    %s35 = scalar_lea.vmem %s0, 8
    %v36 = vld [vmem:[%s35] sm:$0x1]
    %37 = vrot.lane.b32.xlu0 %v36, 48
    %v38 = vpop.permute.xlu0 %37
    %vm39 = vcmask 441728
    %40 = vst.msk [vmem:[#allocation0] sm:$0x1] %vm39, %v38
    %s41 = scalar_lea.vmem %s0, 7
    %v42 = vld [vmem:[%s41] sm:$0x1]
    %43 = vrot.lane.b32.xlu0 %v42, 42
    %v44 = vpop.permute.xlu0 %43
    %vm45 = vcmask 392528
    %46 = vst.msk [vmem:[#allocation0] sm:$0x1] %vm45, %v44
    %s47 = scalar_lea.vmem %s0, 6
    %v48 = vld [vmem:[%s47] sm:$0x1]
    %49 = vrot.lane.b32.xlu0 %v48, 36
    %v50 = vpop.permute.xlu0 %49
    %vm51 = vcmask 343328
    %52 = vst.msk [vmem:[#allocation0] sm:$0x1] %vm51, %v50
    %s53 = scalar_lea.vmem %s0, 5
    %v54 = vld [vmem:[%s53] sm:$0x1]
    %55 = vrot.lane.b32.xlu0 %v54, 30
    %v56 = vpop.permute.xlu0 %55
    %vm57 = vcmask 294128
    %58 = vst.msk [vmem:[#allocation0] sm:$0x1] %vm57, %v56
    %s59 = scalar_lea.vmem %s0, 4
    %v60 = vld [vmem:[%s59] sm:$0x1]
    %61 = vrot.lane.b32.xlu0 %v60, 24
    %v62 = vpop.permute.xlu0 %61
    %vm63 = vcmask 244928
    %64 = vst.msk [vmem:[#allocation0] sm:$0x1] %vm63, %v62
    %s65 = scalar_lea.vmem %s0, 3
    %v66 = vld [vmem:[%s65] sm:$0x1]
    %67 = vrot.lane.b32.xlu0 %v66, 18
    %v68 = vpop.permute.xlu0 %67
    %vm69 = vcmask 195728
    %70 = vst.msk [vmem:[#allocation0] sm:$0x1] %vm69, %v68
    %s71 = scalar_lea.vmem %s0, 2
    %v72 = vld [vmem:[%s71] sm:$0x1]
    %73 = vrot.lane.b32.xlu0 %v72, 12
    %v74 = vpop.permute.xlu0 %73
    %vm75 = vcmask 146528
    %76 = vst.msk [vmem:[#allocation0] sm:$0x1] %vm75, %v74
    %s77 = scalar_lea.vmem %s0, 1
    %v78 = vld [vmem:[%s77] sm:$0x1]
    %79 = vrot.lane.b32.xlu0 %v78, 6
    %v80 = vpop.permute.xlu0 %79
    %vm81 = vcmask 97328
    %82 = vst.msk [vmem:[#allocation0] sm:$0x1] %vm81, %v80
    %s84 = ssub.s32 2, 1
    %v85 = vld [vmem:[#allocation0] sm:%s84]
    %s87 = ssub.s32 2, 1
    %88 = vst [vmem:[%s1] sm:%s87] %v85

// kernel: tile.18
$region0: #{tile.18}
  #allocation0 [shape = 's32[1]{0}', space=sflag, size = 0x4, scoped, tag = 'scoped memory for tile.18']
  %s0 = inlined_call_operand.vmem [shape: f32[16], index: 0, kind: input, shape index: {}]
  %s1 = inlined_call_operand.vmem [shape: f32[5,16], index: 1, kind: output, shape index: {}]
  // Predicated region
  $region2: #{tile.18} parent=0 // pred_check
    _
  $region3: #{tile.18} parent=0 // pred_check_branch
    %3 = sbr.rel (0) target = $region5
  $region4: #{tile.18} parent=0 // pred_region
    _
  $region5: #{tile.18} parent=0 // pred_fallthru
    _
  %v4 = vld [vmem:[%s0] ss:$0 sm:$0xff]
  %5 = vst [vmem:[%s1] sm:$0xff] %v4

// kernel: tile.19
$region0: #{tile.19}
  %s0 = inlined_call_operand.vmem [shape: f32[5,16], index: 0, kind: input, shape index: {}]
  %s1 = inlined_call_operand.vmem [shape: f32[80], index: 1, kind: output, shape index: {}]
  $region1: #{tile.19} parent=0
    #allocation0 [shape = 'u8[4096]{0}', space=vmem, size = 0x1000, scoped, tag = 'scoped mem for output reshape']
    %v2 = vld [vmem:[%s0] sm:$0x1]
    %vm3 = vcmask 130048
    %4 = vst.msk [vmem:[#allocation0] sm:$0x1] %vm3, %v2
    %s5 = scalar_lea.vmem %s0, 4
    %v6 = vld [vmem:[%s5] sm:$0x1]
    %7 = vrot.lane.b32.xlu0 %v6, 64
    %v8 = vpop.permute.xlu0 %7
    %vm9 = vcmask 654848
    %10 = vst.msk [vmem:[#allocation0] sm:$0x1] %vm9, %v8
    %s11 = scalar_lea.vmem %s0, 3
    %v12 = vld [vmem:[%s11] sm:$0x1]
    %13 = vrot.lane.b32.xlu0 %v12, 48
    %v14 = vpop.permute.xlu0 %13
    %vm15 = vcmask 523648
    %16 = vst.msk [vmem:[#allocation0] sm:$0x1] %vm15, %v14
    %s17 = scalar_lea.vmem %s0, 2
    %v18 = vld [vmem:[%s17] sm:$0x1]
    %19 = vrot.lane.b32.xlu0 %v18, 32
    %v20 = vpop.permute.xlu0 %19
    %vm21 = vcmask 392448
    %22 = vst.msk [vmem:[#allocation0] sm:$0x1] %vm21, %v20
    %s23 = scalar_lea.vmem %s0, 1
    %v24 = vld [vmem:[%s23] sm:$0x1]
    %25 = vrot.lane.b32.xlu0 %v24, 16
    %v26 = vpop.permute.xlu0 %25
    %vm27 = vcmask 261248
    %28 = vst.msk [vmem:[#allocation0] sm:$0x1] %vm27, %v26
    %s30 = ssub.s32 2, 1
    %v31 = vld [vmem:[#allocation0] sm:%s30]
    %s33 = ssub.s32 2, 1
    %34 = vst [vmem:[%s1] sm:%s33] %v31

// kernel: feature_block.1
$region0: #{feature_block.1}
  #allocation0 [shape = 'u32[]', space=smem, size = 0x4, offset = 0x4, fixed_abs, tag = 'smem constant byte address 0x4 - core index']
  #allocation1 [shape = 'u32[72,128]{1,0:T(1,128)}', space=vmem, size = 0x9000, scoped, tag = 'internal scratch']
  %s0 = inlined_call_operand.vmem [shape: f32[2,4,8,128], index: 0, kind: input, shape index: {}]
  %s1 = inlined_call_operand.vmem [shape: bf16[640,256], index: 1, kind: input, shape index: {}]
  %s2 = inlined_call_operand.vmem [shape: f32[1,128], index: 2, kind: input, shape index: {}]
  %s3 = inlined_call_operand.vmem [shape: bf16[640,256], index: 3, kind: input, shape index: {}]
  %s4 = inlined_call_operand.vmem [shape: f32[1,128], index: 4, kind: input, shape index: {}]
  %s5 = inlined_call_operand.vmem [shape: f32[2,5,128], index: 5, kind: output, shape index: {}]
  %s6 = sld [smem:[#allocation0]]
  $region53: #{feature_block.1} parent=0
    _
  %s8 = ssub.s32 1, %s6
  %s9 = scalar_select 0, %s8, %s6
  loop: start=0, step=1, limit=4
  $region2: #{feature_block.1} parent=0 // loop_pre_header
    _
  $region3: #{feature_block.1} parent=0 // loop_header
    %s11 = sphi 0, %s15
    %p12 = scmp.ge.s32.totalorder %s11, 4
    %s21 = sphi 0, %s23
    %s24 = sphi 0, %s21
    %s25 = sphi 0, %s24
    %s41 = sphi 0, %s25
    %s45 = sphi 0, %s45
    %s47 = sphi 0, %s45
    %s48 = sphi 0, %s47
    %s62 = sphi 0, %s48
    %s66 = sphi 0, %s66
    %s68 = sphi 0, %s66
    %s69 = sphi 0, %s68
    %s83 = sphi 0, %s69
    %s87 = sphi 0, %s87
    %s89 = sphi 0, %s87
    %s90 = sphi 0, %s89
    %s104 = sphi 0, %s90
    %s108 = sphi 0, %s108
    %s110 = sphi 0, %s108
    %s111 = sphi 0, %s110
    %s125 = sphi 0, %s111
    %s131 = sphi 0, %s133
    %s134 = sphi 0, %s131
    %s135 = sphi 0, %s134
    %s151 = sphi 0, %s135
  $region4: #{feature_block.1} parent=0 // loop_header_branch
    %14 = sbr.rel (%p12) target = $region8
  $region5: #{feature_block.1} parent=0 // loop_body
    %s16 = ssub.s32 %s11, 1
    %s17 = ssub.s32 %s11, 2
    %s18 = sadd.s32 %s11, 1
    %s19 = ssub.s32 %s11, %s18
    %p20 = scmp.eq.s32.totalorder %s19, 0
    %s22 = sadd.s32 %s21, 1
    %s23 = scalar_select %p20, %s21, %s22
    %p26 = pneg %p20
    %p27 = scmp.eq.s32.totalorder %s11, 1
    %p28 = por %p26, %p27
    %p29 = scmp.ne.s32.totalorder %s21, %s24
    %p30 = scmp.eq.s32.totalorder %s11, 0
    %p31 = por %p29, %p30
    %p32 = scmp.ne.s32.totalorder %s21, %s24
    %p33 = scmp.eq.s32.totalorder %s16, 1
    %p34 = por %p32, %p33
    %p35 = scmp.ne.s32.totalorder %s24, %s25
    %p36 = scmp.eq.s32.totalorder %s16, 0
    %p37 = por %p35, %p36
    %p38 = scmp.ne.s32.totalorder %s24, %s25
    %p39 = scmp.eq.s32.totalorder %s17, 1
    %p40 = por %p38, %p39
    %p42 = scmp.ne.s32.totalorder %s25, %s41
    %p43 = scmp.eq.s32.totalorder %s17, 0
    %p44 = por %p42, %p43
    %s46 = sadd.s32 %s45, 1
    %p49 = scmp.eq.s32.totalorder %s11, 1
    %p50 = scmp.ne.s32.totalorder %s45, %s47
    %p51 = scmp.eq.s32.totalorder %s11, 0
    %p52 = por %p50, %p51
    %p53 = scmp.ne.s32.totalorder %s45, %s47
    %p54 = scmp.eq.s32.totalorder %s16, 1
    %p55 = por %p53, %p54
    %p56 = scmp.ne.s32.totalorder %s47, %s48
    %p57 = scmp.eq.s32.totalorder %s16, 0
    %p58 = por %p56, %p57
    %p59 = scmp.ne.s32.totalorder %s47, %s48
    %p60 = scmp.eq.s32.totalorder %s17, 1
    %p61 = por %p59, %p60
    %p63 = scmp.ne.s32.totalorder %s48, %s62
    %p64 = scmp.eq.s32.totalorder %s17, 0
    %p65 = por %p63, %p64
    %s67 = sadd.s32 %s66, 1
    %p70 = scmp.eq.s32.totalorder %s11, 1
    %p71 = scmp.ne.s32.totalorder %s66, %s68
    %p72 = scmp.eq.s32.totalorder %s11, 0
    %p73 = por %p71, %p72
    %p74 = scmp.ne.s32.totalorder %s66, %s68
    %p75 = scmp.eq.s32.totalorder %s16, 1
    %p76 = por %p74, %p75
    %p77 = scmp.ne.s32.totalorder %s68, %s69
    %p78 = scmp.eq.s32.totalorder %s16, 0
    %p79 = por %p77, %p78
    %p80 = scmp.ne.s32.totalorder %s68, %s69
    %p81 = scmp.eq.s32.totalorder %s17, 1
    %p82 = por %p80, %p81
    %p84 = scmp.ne.s32.totalorder %s69, %s83
    %p85 = scmp.eq.s32.totalorder %s17, 0
    %p86 = por %p84, %p85
    %s88 = sadd.s32 %s87, 1
    %p91 = scmp.eq.s32.totalorder %s11, 1
    %p92 = scmp.ne.s32.totalorder %s87, %s89
    %p93 = scmp.eq.s32.totalorder %s11, 0
    %p94 = por %p92, %p93
    %p95 = scmp.ne.s32.totalorder %s87, %s89
    %p96 = scmp.eq.s32.totalorder %s16, 1
    %p97 = por %p95, %p96
    %p98 = scmp.ne.s32.totalorder %s89, %s90
    %p99 = scmp.eq.s32.totalorder %s16, 0
    %p100 = por %p98, %p99
    %p101 = scmp.ne.s32.totalorder %s89, %s90
    %p102 = scmp.eq.s32.totalorder %s17, 1
    %p103 = por %p101, %p102
    %p105 = scmp.ne.s32.totalorder %s90, %s104
    %p106 = scmp.eq.s32.totalorder %s17, 0
    %p107 = por %p105, %p106
    %s109 = sadd.s32 %s108, 1
    %p112 = scmp.eq.s32.totalorder %s11, 1
    %p113 = scmp.ne.s32.totalorder %s108, %s110
    %p114 = scmp.eq.s32.totalorder %s11, 0
    %p115 = por %p113, %p114
    %p116 = scmp.ne.s32.totalorder %s108, %s110
    %p117 = scmp.eq.s32.totalorder %s16, 1
    %p118 = por %p116, %p117
    %p119 = scmp.ne.s32.totalorder %s110, %s111
    %p120 = scmp.eq.s32.totalorder %s16, 0
    %p121 = por %p119, %p120
    %p122 = scmp.ne.s32.totalorder %s110, %s111
    %p123 = scmp.eq.s32.totalorder %s17, 1
    %p124 = por %p122, %p123
    %p126 = scmp.ne.s32.totalorder %s111, %s125
    %p127 = scmp.eq.s32.totalorder %s17, 0
    %p128 = por %p126, %p127
    %s129 = ssub.s32 %s11, %s18
    %p130 = scmp.eq.s32.totalorder %s129, 0
    %s132 = sadd.s32 %s131, 1
    %s133 = scalar_select %p130, %s131, %s132
    %p136 = pneg %p130
    %p137 = scmp.eq.s32.totalorder %s11, 1
    %p138 = por %p136, %p137
    %p139 = scmp.ne.s32.totalorder %s131, %s134
    %p140 = scmp.eq.s32.totalorder %s11, 0
    %p141 = por %p139, %p140
    %p142 = scmp.ne.s32.totalorder %s131, %s134
    %p143 = scmp.eq.s32.totalorder %s16, 1
    %p144 = por %p142, %p143
    %p145 = scmp.ne.s32.totalorder %s134, %s135
    %p146 = scmp.eq.s32.totalorder %s16, 0
    %p147 = por %p145, %p146
    %p148 = scmp.ne.s32.totalorder %s134, %s135
    %p149 = scmp.eq.s32.totalorder %s17, 1
    %p150 = por %p148, %p149
    %p152 = scmp.ne.s32.totalorder %s135, %s151
    %p153 = scmp.eq.s32.totalorder %s17, 0
    %p154 = por %p152, %p153
    %p155 = scmp.le.s32.totalorder 1, %s11
    %p156 = scmp.lt.s32.totalorder %s11, 3
    %p157 = pnand %p155, %p156
    %p158 = pneg %p157
    // Predicated region
    $region9: #{feature_block.1} parent=5 // pred_check
      _
    $region10: #{feature_block.1} parent=5 // pred_check_branch
      %160 = sbr.rel (%p157) target = $region12
    $region11: #{feature_block.1} parent=5 // pred_region
      %s161 = ssub.s32 %s11, 1
      // Predicated region
      $region13: #{feature_block.1} parent=11 // pred_check
        %p162 = pneg %p58
      $region14: #{feature_block.1} parent=11 // pred_check_branch
        %164 = sbr.rel (%p162) target = $region16
      $region15: #{feature_block.1} parent=11 // pred_region
        _
      $region16: #{feature_block.1} parent=11 // pred_fallthru
        _
      // Predicated region
      $region17: #{feature_block.1} parent=11 // pred_check
        %p165 = pneg %p79
      $region18: #{feature_block.1} parent=11 // pred_check_branch
        %167 = sbr.rel (%p165) target = $region20
      $region19: #{feature_block.1} parent=11 // pred_region
        _
      $region20: #{feature_block.1} parent=11 // pred_fallthru
        _
      // Predicated region
      $region21: #{feature_block.1} parent=11 // pred_check
        %p168 = pneg %p100
      $region22: #{feature_block.1} parent=11 // pred_check_branch
        %170 = sbr.rel (%p168) target = $region24
      $region23: #{feature_block.1} parent=11 // pred_region
        _
      $region24: #{feature_block.1} parent=11 // pred_fallthru
        _
      // Predicated region
      $region25: #{feature_block.1} parent=11 // pred_check
        %p171 = pneg %p121
      $region26: #{feature_block.1} parent=11 // pred_check_branch
        %173 = sbr.rel (%p171) target = $region28
      $region27: #{feature_block.1} parent=11 // pred_region
        _
      $region28: #{feature_block.1} parent=11 // pred_fallthru
        _
    $region12: #{feature_block.1} parent=5 // pred_fallthru
      _
    %p174 = scmp.lt.s32.totalorder %s11, 2
    // Predicated region
    $region29: #{feature_block.1} parent=5 // pred_check
      %p175 = pneg %p174
    $region30: #{feature_block.1} parent=5 // pred_check_branch
      %177 = sbr.rel (%p175) target = $region32
    $region31: #{feature_block.1} parent=5 // pred_region
      // Predicated region
      $region33: #{feature_block.1} parent=31 // pred_check
        %p178 = pneg %p31
      $region34: #{feature_block.1} parent=31 // pred_check_branch
        %180 = sbr.rel (%p178) target = $region36
      $region35: #{feature_block.1} parent=31 // pred_region
        %p181 = scmp.lt.s32.totalorder %s11, 1
        %s182 = scalar_select %p181, %s11, 1
        %s183 = smul.addr %s182, 4
        %s184 = smul.addr %s183, 8
        %s185 = scalar_lea.vmem %s0, %s184
      $region36: #{feature_block.1} parent=31 // pred_fallthru
        _
    $region32: #{feature_block.1} parent=5 // pred_fallthru
      _
    %p186 = scmp.le.s32.totalorder 1, %s11
    %p187 = scmp.lt.s32.totalorder %s11, 3
    %p188 = pnand %p186, %p187
    %p189 = pneg %p188
    // Predicated region
    $region37: #{feature_block.1} parent=5 // pred_check
      _
    $region38: #{feature_block.1} parent=5 // pred_check_branch
      %191 = sbr.rel (%p188) target = $region40
    $region39: #{feature_block.1} parent=5 // pred_region
      %s192 = ssub.s32 %s11, 1
      %p193 = scmp.lt.s32.totalorder %s16, 1
      %s194 = scalar_select %p193, %s16, 1
      %s195 = smul.addr %s194, 4
      %s196 = smul.addr %s195, 8
      %s197 = scalar_lea.vmem %s0, %s196
      %p198 = pneg %p37
      %p199 = pneg %p34
      %p200 = pneg %p58
      %p201 = pneg %p55
      %p202 = pneg %p79
      %p203 = pneg %p76
      %p204 = pneg %p100
      %p205 = pneg %p97
      %p206 = pneg %p121
      %p207 = pneg %p118
      %p208 = pneg %p147
      %p209 = pneg %p144
      %p210 = scmp.lt.s32.totalorder %s16, 1
      %s211 = scalar_select %p210, %s16, 1
      %s212 = smul.addr %s211, 8
      %s213 = scalar_lea.vmem %s5, %s212
      %p214 = scmp.lt.s32.totalorder %s16, 1
      %s215 = scalar_select %p214, %s16, 1
      %s216 = smul.addr %s215, 4
      %s217 = smul.addr %s216, 8
      %s218 = scalar_lea.vmem %s0, %s217
      %p219 = scmp.lt.s32.totalorder %s16, 1
      %s220 = scalar_select %p219, %s16, 1
      %s221 = smul.addr %s220, 8
      %s222 = scalar_lea.vmem %s5, %s221
      %v223 = vld [vmem:[%s1] sm:$0xff]
      %v224 = vld [vmem:[%s1 + $0x8] sm:$0xff]
      %v225 = vld [vmem:[%s1 + $0x10] sm:$0xff]
      %v226 = vld [vmem:[%s1 + $0x18] sm:$0xff]
      %v227 = vld [vmem:[%s1 + $0x20] sm:$0xff]
      %v228 = vld [vmem:[%s1 + $0x28] sm:$0xff]
      %v229 = vld [vmem:[%s1 + $0x30] sm:$0xff]
      %v230 = vld [vmem:[%s1 + $0x38] sm:$0xff]
      %v231 = vld [vmem:[%s1 + $0x40] sm:$0xff]
      %v232 = vld [vmem:[%s1 + $0x48] sm:$0xff]
      %v233 = vld [vmem:[%s1 + $0x50] sm:$0xff]
      %v234 = vld [vmem:[%s1 + $0x58] sm:$0xff]
      %v235 = vld [vmem:[%s1 + $0x60] sm:$0xff]
      %v236 = vld [vmem:[%s1 + $0x68] sm:$0xff]
      %v237 = vld [vmem:[%s1 + $0x70] sm:$0xff]
      %v238 = vld [vmem:[%s1 + $0x78] sm:$0xff]
      %v239 = vld [vmem:[%s1 + $0x80] sm:$0xff]
      %v240 = vld [vmem:[%s1 + $0x88] sm:$0xff]
      %v241 = vld [vmem:[%s1 + $0x90] sm:$0xff]
      %v242 = vld [vmem:[%s1 + $0x98] sm:$0xff]
      %v243 = vld [vmem:[%s1 + $0xa0] sm:$0xff]
      %v244 = vld [vmem:[%s1 + $0xa8] sm:$0xff]
      %v245 = vld [vmem:[%s1 + $0xb0] sm:$0xff]
      %v246 = vld [vmem:[%s1 + $0xb8] sm:$0xff]
      %v247 = vld [vmem:[%s1 + $0xc0] sm:$0xff]
      %v248 = vld [vmem:[%s1 + $0xc8] sm:$0xff]
      %v249 = vld [vmem:[%s1 + $0xd0] sm:$0xff]
      %v250 = vld [vmem:[%s1 + $0xd8] sm:$0xff]
      %v251 = vld [vmem:[%s1 + $0xe0] sm:$0xff]
      %v252 = vld [vmem:[%s1 + $0xe8] sm:$0xff]
      %v253 = vld [vmem:[%s1 + $0xf0] sm:$0xff]
      %v254 = vld [vmem:[%s1 + $0xf8] sm:$0xff]
      %v255 = vld [vmem:[%s1 + $0x100] sm:$0xff]
      %v256 = vld [vmem:[%s1 + $0x108] sm:$0xff]
      %v257 = vld [vmem:[%s1 + $0x110] sm:$0xff]
      %v258 = vld [vmem:[%s1 + $0x118] sm:$0xff]
      %v259 = vld [vmem:[%s1 + $0x120] sm:$0xff]
      %v260 = vld [vmem:[%s1 + $0x128] sm:$0xff]
      %v261 = vld [vmem:[%s1 + $0x130] sm:$0xff]
      %v262 = vld [vmem:[%s1 + $0x138] sm:$0xff]
      %v263 = vld [vmem:[%s1 + $0x140] sm:$0xff]
      %v264 = vld [vmem:[%s1 + $0x148] sm:$0xff]
      %v265 = vld [vmem:[%s1 + $0x150] sm:$0xff]
      %v266 = vld [vmem:[%s1 + $0x158] sm:$0xff]
      %v267 = vld [vmem:[%s1 + $0x160] sm:$0xff]
      %v268 = vld [vmem:[%s1 + $0x168] sm:$0xff]
      %v269 = vld [vmem:[%s1 + $0x170] sm:$0xff]
      %v270 = vld [vmem:[%s1 + $0x178] sm:$0xff]
      %v271 = vld [vmem:[%s1 + $0x180] sm:$0xff]
      %v272 = vld [vmem:[%s1 + $0x188] sm:$0xff]
      %v273 = vld [vmem:[%s1 + $0x190] sm:$0xff]
      %v274 = vld [vmem:[%s1 + $0x198] sm:$0xff]
      %v275 = vld [vmem:[%s1 + $0x1a0] sm:$0xff]
      %v276 = vld [vmem:[%s1 + $0x1a8] sm:$0xff]
      %v277 = vld [vmem:[%s1 + $0x1b0] sm:$0xff]
      %v278 = vld [vmem:[%s1 + $0x1b8] sm:$0xff]
      %v279 = vld [vmem:[%s1 + $0x1c0] sm:$0xff]
      %v280 = vld [vmem:[%s1 + $0x1c8] sm:$0xff]
      %v281 = vld [vmem:[%s1 + $0x1d0] sm:$0xff]
      %v282 = vld [vmem:[%s1 + $0x1d8] sm:$0xff]
      %v283 = vld [vmem:[%s1 + $0x1e0] sm:$0xff]
      %v284 = vld [vmem:[%s1 + $0x1e8] sm:$0xff]
      %v285 = vld [vmem:[%s1 + $0x1f0] sm:$0xff]
      %v286 = vld [vmem:[%s1 + $0x1f8] sm:$0xff]
      %v287 = vld [vmem:[%s1 + $0x200] sm:$0xff]
      %v288 = vld [vmem:[%s1 + $0x208] sm:$0xff]
      %v289 = vld [vmem:[%s1 + $0x210] sm:$0xff]
      %v290 = vld [vmem:[%s1 + $0x218] sm:$0xff]
      %v291 = vld [vmem:[%s1 + $0x220] sm:$0xff]
      %v292 = vld [vmem:[%s1 + $0x228] sm:$0xff]
      %v293 = vld [vmem:[%s1 + $0x230] sm:$0xff]
      %v294 = vld [vmem:[%s1 + $0x238] sm:$0xff]
      %v295 = vld [vmem:[%s1 + $0x240] sm:$0xff]
      %v296 = vld [vmem:[%s1 + $0x248] sm:$0xff]
      %v297 = vld [vmem:[%s1 + $0x250] sm:$0xff]
      %v298 = vld [vmem:[%s1 + $0x258] sm:$0xff]
      %v299 = vld [vmem:[%s1 + $0x260] sm:$0xff]
      %v300 = vld [vmem:[%s1 + $0x268] sm:$0xff]
      %v301 = vld [vmem:[%s1 + $0x270] sm:$0xff]
      %v302 = vld [vmem:[%s1 + $0x278] sm:$0xff]
      %v303 = vld [vmem:[%s3] sm:$0xff]
      %v304 = vld [vmem:[%s3 + $0x8] sm:$0xff]
      %v305 = vld [vmem:[%s3 + $0x10] sm:$0xff]
      %v306 = vld [vmem:[%s3 + $0x18] sm:$0xff]
      %v307 = vld [vmem:[%s3 + $0x20] sm:$0xff]
      %v308 = vld [vmem:[%s3 + $0x28] sm:$0xff]
      %v309 = vld [vmem:[%s3 + $0x30] sm:$0xff]
      %v310 = vld [vmem:[%s3 + $0x38] sm:$0xff]
      %v311 = vld [vmem:[%s3 + $0x40] sm:$0xff]
      %v312 = vld [vmem:[%s3 + $0x48] sm:$0xff]
      %v313 = vld [vmem:[%s3 + $0x50] sm:$0xff]
      %v314 = vld [vmem:[%s3 + $0x58] sm:$0xff]
      %v315 = vld [vmem:[%s3 + $0x60] sm:$0xff]
      %v316 = vld [vmem:[%s3 + $0x68] sm:$0xff]
      %v317 = vld [vmem:[%s3 + $0x70] sm:$0xff]
      %v318 = vld [vmem:[%s3 + $0x78] sm:$0xff]
      %v319 = vld [vmem:[%s3 + $0x80] sm:$0xff]
      %v320 = vld [vmem:[%s3 + $0x88] sm:$0xff]
      %v321 = vld [vmem:[%s3 + $0x90] sm:$0xff]
      %v322 = vld [vmem:[%s3 + $0x98] sm:$0xff]
      %v323 = vld [vmem:[%s3 + $0xa0] sm:$0xff]
      %v324 = vld [vmem:[%s3 + $0xa8] sm:$0xff]
      %v325 = vld [vmem:[%s3 + $0xb0] sm:$0xff]
      %v326 = vld [vmem:[%s3 + $0xb8] sm:$0xff]
      %v327 = vld [vmem:[%s3 + $0xc0] sm:$0xff]
      %v328 = vld [vmem:[%s3 + $0xc8] sm:$0xff]
      %v329 = vld [vmem:[%s3 + $0xd0] sm:$0xff]
      %v330 = vld [vmem:[%s3 + $0xd8] sm:$0xff]
      %v331 = vld [vmem:[%s3 + $0xe0] sm:$0xff]
      %v332 = vld [vmem:[%s3 + $0xe8] sm:$0xff]
      %v333 = vld [vmem:[%s3 + $0xf0] sm:$0xff]
      %v334 = vld [vmem:[%s3 + $0xf8] sm:$0xff]
      %v335 = vld [vmem:[%s3 + $0x100] sm:$0xff]
      %v336 = vld [vmem:[%s3 + $0x108] sm:$0xff]
      %v337 = vld [vmem:[%s3 + $0x110] sm:$0xff]
      %v338 = vld [vmem:[%s3 + $0x118] sm:$0xff]
      %v339 = vld [vmem:[%s3 + $0x120] sm:$0xff]
      %v340 = vld [vmem:[%s3 + $0x128] sm:$0xff]
      %v341 = vld [vmem:[%s3 + $0x130] sm:$0xff]
      %v342 = vld [vmem:[%s3 + $0x138] sm:$0xff]
      %v343 = vld [vmem:[%s3 + $0x140] sm:$0xff]
      %v344 = vld [vmem:[%s3 + $0x148] sm:$0xff]
      %v345 = vld [vmem:[%s3 + $0x150] sm:$0xff]
      %v346 = vld [vmem:[%s3 + $0x158] sm:$0xff]
      %v347 = vld [vmem:[%s3 + $0x160] sm:$0xff]
      %v348 = vld [vmem:[%s3 + $0x168] sm:$0xff]
      %v349 = vld [vmem:[%s3 + $0x170] sm:$0xff]
      %v350 = vld [vmem:[%s3 + $0x178] sm:$0xff]
      %v351 = vld [vmem:[%s3 + $0x180] sm:$0xff]
      %v352 = vld [vmem:[%s3 + $0x188] sm:$0xff]
      %v353 = vld [vmem:[%s3 + $0x190] sm:$0xff]
      %v354 = vld [vmem:[%s3 + $0x198] sm:$0xff]
      %v355 = vld [vmem:[%s3 + $0x1a0] sm:$0xff]
      %v356 = vld [vmem:[%s3 + $0x1a8] sm:$0xff]
      %v357 = vld [vmem:[%s3 + $0x1b0] sm:$0xff]
      %v358 = vld [vmem:[%s3 + $0x1b8] sm:$0xff]
      %v359 = vld [vmem:[%s3 + $0x1c0] sm:$0xff]
      %v360 = vld [vmem:[%s3 + $0x1c8] sm:$0xff]
      %v361 = vld [vmem:[%s3 + $0x1d0] sm:$0xff]
      %v362 = vld [vmem:[%s3 + $0x1d8] sm:$0xff]
      %v363 = vld [vmem:[%s3 + $0x1e0] sm:$0xff]
      %v364 = vld [vmem:[%s3 + $0x1e8] sm:$0xff]
      %v365 = vld [vmem:[%s3 + $0x1f0] sm:$0xff]
      %v366 = vld [vmem:[%s3 + $0x1f8] sm:$0xff]
      %v367 = vld [vmem:[%s3 + $0x200] sm:$0xff]
      %v368 = vld [vmem:[%s3 + $0x208] sm:$0xff]
      %v369 = vld [vmem:[%s3 + $0x210] sm:$0xff]
      %v370 = vld [vmem:[%s3 + $0x218] sm:$0xff]
      %v371 = vld [vmem:[%s3 + $0x220] sm:$0xff]
      %v372 = vld [vmem:[%s3 + $0x228] sm:$0xff]
      %v373 = vld [vmem:[%s3 + $0x230] sm:$0xff]
      %v374 = vld [vmem:[%s3 + $0x238] sm:$0xff]
      %v375 = vld [vmem:[%s3 + $0x240] sm:$0xff]
      %v376 = vld [vmem:[%s3 + $0x248] sm:$0xff]
      %v377 = vld [vmem:[%s3 + $0x250] sm:$0xff]
      %v378 = vld [vmem:[%s3 + $0x258] sm:$0xff]
      %v379 = vld [vmem:[%s3 + $0x260] sm:$0xff]
      %v380 = vld [vmem:[%s3 + $0x268] sm:$0xff]
      %v381 = vld [vmem:[%s3 + $0x270] sm:$0xff]
      %v382 = vld [vmem:[%s3 + $0x278] sm:$0xff]
      %v383 = vld [vmem:[%s2] sm:$0x1]
      %v384 = vld [vmem:[%s4] sm:$0x1]
      %v385 = vld [vmem:[%s218] sm:$0x7f]
      %s386 = scalar_lea.vmem %s218, 8
      %v387 = vld [vmem:[%s386] sm:$0x7f]
      %s388 = scalar_lea.vmem %s218, 16
      %v389 = vld [vmem:[%s388] sm:$0x7f]
      %s390 = scalar_lea.vmem %s218, 24
      %v391 = vld [vmem:[%s390] sm:$0x7f]
      %v392 = vld [vmem:[%s218 + $0x1] sm:$0x7f]
      %v393 = vpack.c.bf16 %v385, %v385
      %v394 = vpack.c.bf16 %v387, %v387
      %v395 = vpack.c.bf16 %v389, %v389
      %v396 = vpack.c.bf16 %v391, %v391
      %v397 = vpack.c.bf16 %v392, %v392
      %v478 = vunpack.c.l.b16 %v223
      %v479 = vunpack.c.h.b16 %v223
      %v480 = vunpack.c.l.b16 %v224
      %v481 = vunpack.c.h.b16 %v224
      %v482 = vunpack.c.l.b16 %v225
      %v483 = vunpack.c.h.b16 %v225
      %v484 = vunpack.c.l.b16 %v226
      %v485 = vunpack.c.h.b16 %v226
      %v486 = vunpack.c.l.b16 %v227
      %v487 = vunpack.c.h.b16 %v227
      %v488 = vunpack.c.l.b16 %v228
      %v489 = vunpack.c.h.b16 %v228
      %v490 = vunpack.c.l.b16 %v229
      %v491 = vunpack.c.h.b16 %v229
      %v492 = vunpack.c.l.b16 %v230
      %v493 = vunpack.c.h.b16 %v230
      %v494 = vunpack.c.l.b16 %v231
      %v495 = vunpack.c.h.b16 %v231
      %v496 = vunpack.c.l.b16 %v232
      %v497 = vunpack.c.h.b16 %v232
      %v498 = vunpack.c.l.b16 %v233
      %v499 = vunpack.c.h.b16 %v233
      %v500 = vunpack.c.l.b16 %v234
      %v501 = vunpack.c.h.b16 %v234
      %v502 = vunpack.c.l.b16 %v235
      %v503 = vunpack.c.h.b16 %v235
      %v504 = vunpack.c.l.b16 %v236
      %v505 = vunpack.c.h.b16 %v236
      %v506 = vunpack.c.l.b16 %v237
      %v507 = vunpack.c.h.b16 %v237
      %v508 = vunpack.c.l.b16 %v238
      %v509 = vunpack.c.h.b16 %v238
      %v510 = vunpack.c.l.b16 %v239
      %v511 = vunpack.c.h.b16 %v239
      %v512 = vunpack.c.l.b16 %v240
      %v513 = vunpack.c.h.b16 %v240
      %v514 = vunpack.c.l.b16 %v241
      %v515 = vunpack.c.h.b16 %v241
      %v516 = vunpack.c.l.b16 %v242
      %v517 = vunpack.c.h.b16 %v242
      %v518 = vunpack.c.l.b16 %v243
      %v519 = vunpack.c.h.b16 %v243
      %v520 = vunpack.c.l.b16 %v244
      %v521 = vunpack.c.h.b16 %v244
      %v522 = vunpack.c.l.b16 %v245
      %v523 = vunpack.c.h.b16 %v245
      %v524 = vunpack.c.l.b16 %v246
      %v525 = vunpack.c.h.b16 %v246
      %v526 = vunpack.c.l.b16 %v247
      %v527 = vunpack.c.h.b16 %v247
      %v528 = vunpack.c.l.b16 %v248
      %v529 = vunpack.c.h.b16 %v248
      %v530 = vunpack.c.l.b16 %v249
      %v531 = vunpack.c.h.b16 %v249
      %v532 = vunpack.c.l.b16 %v250
      %v533 = vunpack.c.h.b16 %v250
      %v534 = vunpack.c.l.b16 %v251
      %v535 = vunpack.c.h.b16 %v251
      %v536 = vunpack.c.l.b16 %v252
      %v537 = vunpack.c.h.b16 %v252
      %v538 = vunpack.c.l.b16 %v253
      %v539 = vunpack.c.h.b16 %v253
      %v540 = vunpack.c.l.b16 %v254
      %v541 = vunpack.c.h.b16 %v254
      %v542 = vunpack.c.l.b16 %v255
      %v543 = vunpack.c.h.b16 %v255
      %v544 = vunpack.c.l.b16 %v256
      %v545 = vunpack.c.h.b16 %v256
      %v546 = vunpack.c.l.b16 %v257
      %v547 = vunpack.c.h.b16 %v257
      %v548 = vunpack.c.l.b16 %v258
      %v549 = vunpack.c.h.b16 %v258
      %v550 = vunpack.c.l.b16 %v259
      %v551 = vunpack.c.h.b16 %v259
      %v552 = vunpack.c.l.b16 %v260
      %v553 = vunpack.c.h.b16 %v260
      %v554 = vunpack.c.l.b16 %v261
      %v555 = vunpack.c.h.b16 %v261
      %v556 = vunpack.c.l.b16 %v262
      %v557 = vunpack.c.h.b16 %v262
      %v558 = vunpack.c.l.b16 %v263
      %v559 = vunpack.c.h.b16 %v263
      %v560 = vunpack.c.l.b16 %v264
      %v561 = vunpack.c.h.b16 %v264
      %v562 = vunpack.c.l.b16 %v265
      %v563 = vunpack.c.h.b16 %v265
      %v564 = vunpack.c.l.b16 %v266
      %v565 = vunpack.c.h.b16 %v266
      %v566 = vunpack.c.l.b16 %v267
      %v567 = vunpack.c.h.b16 %v267
      %v568 = vunpack.c.l.b16 %v268
      %v569 = vunpack.c.h.b16 %v268
      %v570 = vunpack.c.l.b16 %v269
      %v571 = vunpack.c.h.b16 %v269
      %v572 = vunpack.c.l.b16 %v270
      %v573 = vunpack.c.h.b16 %v270
      %v574 = vunpack.c.l.b16 %v271
      %v575 = vunpack.c.h.b16 %v271
      %v576 = vunpack.c.l.b16 %v272
      %v577 = vunpack.c.h.b16 %v272
      %v578 = vunpack.c.l.b16 %v273
      %v579 = vunpack.c.h.b16 %v273
      %v580 = vunpack.c.l.b16 %v274
      %v581 = vunpack.c.h.b16 %v274
      %v582 = vunpack.c.l.b16 %v275
      %v583 = vunpack.c.h.b16 %v275
      %v584 = vunpack.c.l.b16 %v276
      %v585 = vunpack.c.h.b16 %v276
      %v586 = vunpack.c.l.b16 %v277
      %v587 = vunpack.c.h.b16 %v277
      %v588 = vunpack.c.l.b16 %v278
      %v589 = vunpack.c.h.b16 %v278
      %v590 = vunpack.c.l.b16 %v279
      %v591 = vunpack.c.h.b16 %v279
      %v592 = vunpack.c.l.b16 %v280
      %v593 = vunpack.c.h.b16 %v280
      %v594 = vunpack.c.l.b16 %v281
      %v595 = vunpack.c.h.b16 %v281
      %v596 = vunpack.c.l.b16 %v282
      %v597 = vunpack.c.h.b16 %v282
      %v598 = vunpack.c.l.b16 %v283
      %v599 = vunpack.c.h.b16 %v283
      %v600 = vunpack.c.l.b16 %v284
      %v601 = vunpack.c.h.b16 %v284
      %v602 = vunpack.c.l.b16 %v285
      %v603 = vunpack.c.h.b16 %v285
      %v604 = vunpack.c.l.b16 %v286
      %v605 = vunpack.c.h.b16 %v286
      %v606 = vunpack.c.l.b16 %v287
      %v607 = vunpack.c.h.b16 %v287
      %v608 = vunpack.c.l.b16 %v288
      %v609 = vunpack.c.h.b16 %v288
      %v610 = vunpack.c.l.b16 %v289
      %v611 = vunpack.c.h.b16 %v289
      %v612 = vunpack.c.l.b16 %v290
      %v613 = vunpack.c.h.b16 %v290
      %v614 = vunpack.c.l.b16 %v291
      %v615 = vunpack.c.h.b16 %v291
      %v616 = vunpack.c.l.b16 %v292
      %v617 = vunpack.c.h.b16 %v292
      %v618 = vunpack.c.l.b16 %v293
      %v619 = vunpack.c.h.b16 %v293
      %v620 = vunpack.c.l.b16 %v294
      %v621 = vunpack.c.h.b16 %v294
      %v622 = vunpack.c.l.b16 %v295
      %v623 = vunpack.c.h.b16 %v295
      %v624 = vunpack.c.l.b16 %v296
      %v625 = vunpack.c.h.b16 %v296
      %v626 = vunpack.c.l.b16 %v297
      %v627 = vunpack.c.h.b16 %v297
      %v628 = vunpack.c.l.b16 %v298
      %v629 = vunpack.c.h.b16 %v298
      %v630 = vunpack.c.l.b16 %v299
      %v631 = vunpack.c.h.b16 %v299
      %v632 = vunpack.c.l.b16 %v300
      %v633 = vunpack.c.h.b16 %v300
      %v634 = vunpack.c.l.b16 %v301
      %v635 = vunpack.c.h.b16 %v301
      %v636 = vunpack.c.l.b16 %v302
      %v637 = vunpack.c.h.b16 %v302
      %v638 = vpack.c.b16 %v480, %v478
      %v639 = vpack.c.b16 %v481, %v479
      %v640 = vpack.c.b16 %v484, %v482
      %v641 = vpack.c.b16 %v485, %v483
      %v642 = vpack.c.b16 %v488, %v486
      %v643 = vpack.c.b16 %v489, %v487
      %v644 = vpack.c.b16 %v492, %v490
      %v645 = vpack.c.b16 %v493, %v491
      %v646 = vpack.c.b16 %v496, %v494
      %v647 = vpack.c.b16 %v497, %v495
      %v648 = vpack.c.b16 %v500, %v498
      %v649 = vpack.c.b16 %v501, %v499
      %v650 = vpack.c.b16 %v504, %v502
      %v651 = vpack.c.b16 %v505, %v503
      %v652 = vpack.c.b16 %v508, %v506
      %v653 = vpack.c.b16 %v509, %v507
      %v654 = vpack.c.b16 %v512, %v510
      %v655 = vpack.c.b16 %v513, %v511
      %v656 = vpack.c.b16 %v516, %v514
      %v657 = vpack.c.b16 %v517, %v515
      %v658 = vpack.c.b16 %v520, %v518
      %v659 = vpack.c.b16 %v521, %v519
      %v660 = vpack.c.b16 %v524, %v522
      %v661 = vpack.c.b16 %v525, %v523
      %v662 = vpack.c.b16 %v528, %v526
      %v663 = vpack.c.b16 %v529, %v527
      %v664 = vpack.c.b16 %v532, %v530
      %v665 = vpack.c.b16 %v533, %v531
      %v666 = vpack.c.b16 %v536, %v534
      %v667 = vpack.c.b16 %v537, %v535
      %v668 = vpack.c.b16 %v540, %v538
      %v669 = vpack.c.b16 %v541, %v539
      %v670 = vpack.c.b16 %v544, %v542
      %v671 = vpack.c.b16 %v545, %v543
      %v672 = vpack.c.b16 %v548, %v546
      %v673 = vpack.c.b16 %v549, %v547
      %v674 = vpack.c.b16 %v552, %v550
      %v675 = vpack.c.b16 %v553, %v551
      %v676 = vpack.c.b16 %v556, %v554
      %v677 = vpack.c.b16 %v557, %v555
      %v678 = vpack.c.b16 %v560, %v558
      %v679 = vpack.c.b16 %v561, %v559
      %v680 = vpack.c.b16 %v564, %v562
      %v681 = vpack.c.b16 %v565, %v563
      %v682 = vpack.c.b16 %v568, %v566
      %v683 = vpack.c.b16 %v569, %v567
      %v684 = vpack.c.b16 %v572, %v570
      %v685 = vpack.c.b16 %v573, %v571
      %v686 = vpack.c.b16 %v576, %v574
      %v687 = vpack.c.b16 %v577, %v575
      %v688 = vpack.c.b16 %v580, %v578
      %v689 = vpack.c.b16 %v581, %v579
      %v690 = vpack.c.b16 %v584, %v582
      %v691 = vpack.c.b16 %v585, %v583
      %v692 = vpack.c.b16 %v588, %v586
      %v693 = vpack.c.b16 %v589, %v587
      %v694 = vpack.c.b16 %v592, %v590
      %v695 = vpack.c.b16 %v593, %v591
      %v696 = vpack.c.b16 %v596, %v594
      %v697 = vpack.c.b16 %v597, %v595
      %v698 = vpack.c.b16 %v600, %v598
      %v699 = vpack.c.b16 %v601, %v599
      %v700 = vpack.c.b16 %v604, %v602
      %v701 = vpack.c.b16 %v605, %v603
      %v702 = vpack.c.b16 %v608, %v606
      %v703 = vpack.c.b16 %v609, %v607
      %v704 = vpack.c.b16 %v612, %v610
      %v705 = vpack.c.b16 %v613, %v611
      %v706 = vpack.c.b16 %v616, %v614
      %v707 = vpack.c.b16 %v617, %v615
      %v708 = vpack.c.b16 %v620, %v618
      %v709 = vpack.c.b16 %v621, %v619
      %v710 = vpack.c.b16 %v624, %v622
      %v711 = vpack.c.b16 %v625, %v623
      %v712 = vpack.c.b16 %v628, %v626
      %v713 = vpack.c.b16 %v629, %v627
      %v714 = vpack.c.b16 %v632, %v630
      %v715 = vpack.c.b16 %v633, %v631
      %v716 = vpack.c.b16 %v636, %v634
      %v717 = vpack.c.b16 %v637, %v635
      %798 = vmatpush.bf16.msra.mxu0 %v652
      %799 = vmatpush.bf16.msra.mxu0 %v650
      %800 = vmatpush.bf16.msra.mxu0 %v648
      %801 = vmatpush.bf16.msra.mxu0 %v646
      %802 = vmatpush.bf16.msra.mxu0 %v644
      %803 = vmatpush.bf16.msra.mxu0 %v642
      %804 = vmatpush.bf16.msra.mxu0 %v640
      %805 = vmatpush.bf16.msra.mxu0 %v638
      %806 = vmatmul.bf16.gmra.mxu0 %v393
      %v807 = vpop.f32.mrf.mxu0
      %v808 = vadd.f32 0.0, %v807
      %v809 = vpop.f32.mrf.mxu0
      %810 = vdwg.mxu0
      %811 = vmatpush.bf16.msra.mxu0 %v668
      %812 = vmatpush.bf16.msra.mxu0 %v666
      %813 = vmatpush.bf16.msra.mxu0 %v664
      %814 = vmatpush.bf16.msra.mxu0 %v662
      %815 = vmatpush.bf16.msra.mxu0 %v660
      %816 = vmatpush.bf16.msra.mxu0 %v658
      %817 = vmatpush.bf16.msra.mxu0 %v656
      %818 = vmatpush.bf16.msra.mxu0 %v654
      %819 = vmatmul.bf16.gmra.mxu0 %v394
      %v820 = vpop.f32.mrf.mxu0
      %v821 = vadd.f32 %v808, %v820
      %v822 = vpop.f32.mrf.mxu0
      %823 = vdwg.mxu0
      %824 = vmatpush.bf16.msra.mxu0 %v684
      %825 = vmatpush.bf16.msra.mxu0 %v682
      %826 = vmatpush.bf16.msra.mxu0 %v680
      %827 = vmatpush.bf16.msra.mxu0 %v678
      %828 = vmatpush.bf16.msra.mxu0 %v676
      %829 = vmatpush.bf16.msra.mxu0 %v674
      %830 = vmatpush.bf16.msra.mxu0 %v672
      %831 = vmatpush.bf16.msra.mxu0 %v670
      %832 = vmatmul.bf16.gmra.mxu0 %v395
      %v833 = vpop.f32.mrf.mxu0
      %v834 = vadd.f32 %v821, %v833
      %v835 = vpop.f32.mrf.mxu0
      %836 = vdwg.mxu0
      %837 = vmatpush.bf16.msra.mxu0 %v700
      %838 = vmatpush.bf16.msra.mxu0 %v698
      %839 = vmatpush.bf16.msra.mxu0 %v696
      %840 = vmatpush.bf16.msra.mxu0 %v694
      %841 = vmatpush.bf16.msra.mxu0 %v692
      %842 = vmatpush.bf16.msra.mxu0 %v690
      %843 = vmatpush.bf16.msra.mxu0 %v688
      %844 = vmatpush.bf16.msra.mxu0 %v686
      %845 = vmatmul.bf16.gmra.mxu0 %v396
      %v846 = vpop.f32.mrf.mxu0
      %v847 = vadd.f32 %v834, %v846
      %v848 = vpop.f32.mrf.mxu0
      %849 = vdwg.mxu0
      %850 = vmatpush.bf16.msra.mxu0 %v716
      %851 = vmatpush.bf16.msra.mxu0 %v714
      %852 = vmatpush.bf16.msra.mxu0 %v712
      %853 = vmatpush.bf16.msra.mxu0 %v710
      %854 = vmatpush.bf16.msra.mxu0 %v708
      %855 = vmatpush.bf16.msra.mxu0 %v706
      %856 = vmatpush.bf16.msra.mxu0 %v704
      %857 = vmatpush.bf16.msra.mxu0 %v702
      %858 = vmatmul.bf16.gmra.mxu0 %v397
      %v859 = vpop.f32.mrf.mxu0
      %v860 = vadd.f32 %v847, %v859
      %v861 = vpop.f32.mrf.mxu0
      %862 = vdwg.mxu0
      %863 = vmatpush.bf16.msra.mxu0 %v653
      %864 = vmatpush.bf16.msra.mxu0 %v651
      %865 = vmatpush.bf16.msra.mxu0 %v649
      %866 = vmatpush.bf16.msra.mxu0 %v647
      %867 = vmatpush.bf16.msra.mxu0 %v645
      %868 = vmatpush.bf16.msra.mxu0 %v643
      %869 = vmatpush.bf16.msra.mxu0 %v641
      %870 = vmatpush.bf16.msra.mxu0 %v639
      %871 = vmatmul.bf16.gmra.mxu0 %v393
      %v872 = vpop.f32.mrf.mxu0
      %v873 = vadd.f32 0.0, %v872
      %v874 = vpop.f32.mrf.mxu0
      %875 = vdwg.mxu0
      %876 = vmatpush.bf16.msra.mxu0 %v669
      %877 = vmatpush.bf16.msra.mxu0 %v667
      %878 = vmatpush.bf16.msra.mxu0 %v665
      %879 = vmatpush.bf16.msra.mxu0 %v663
      %880 = vmatpush.bf16.msra.mxu0 %v661
      %881 = vmatpush.bf16.msra.mxu0 %v659
      %882 = vmatpush.bf16.msra.mxu0 %v657
      %883 = vmatpush.bf16.msra.mxu0 %v655
      %884 = vmatmul.bf16.gmra.mxu0 %v394
      %v885 = vpop.f32.mrf.mxu0
      %v886 = vadd.f32 %v873, %v885
      %v887 = vpop.f32.mrf.mxu0
      %888 = vdwg.mxu0
      %889 = vmatpush.bf16.msra.mxu0 %v685
      %890 = vmatpush.bf16.msra.mxu0 %v683
      %891 = vmatpush.bf16.msra.mxu0 %v681
      %892 = vmatpush.bf16.msra.mxu0 %v679
      %893 = vmatpush.bf16.msra.mxu0 %v677
      %894 = vmatpush.bf16.msra.mxu0 %v675
      %895 = vmatpush.bf16.msra.mxu0 %v673
      %896 = vmatpush.bf16.msra.mxu0 %v671
      %897 = vmatmul.bf16.gmra.mxu0 %v395
      %v898 = vpop.f32.mrf.mxu0
      %v899 = vadd.f32 %v886, %v898
      %v900 = vpop.f32.mrf.mxu0
      %901 = vdwg.mxu0
      %902 = vmatpush.bf16.msra.mxu0 %v701
      %903 = vmatpush.bf16.msra.mxu0 %v699
      %904 = vmatpush.bf16.msra.mxu0 %v697
      %905 = vmatpush.bf16.msra.mxu0 %v695
      %906 = vmatpush.bf16.msra.mxu0 %v693
      %907 = vmatpush.bf16.msra.mxu0 %v691
      %908 = vmatpush.bf16.msra.mxu0 %v689
      %909 = vmatpush.bf16.msra.mxu0 %v687
      %910 = vmatmul.bf16.gmra.mxu0 %v396
      %v911 = vpop.f32.mrf.mxu0
      %v912 = vadd.f32 %v899, %v911
      %v913 = vpop.f32.mrf.mxu0
      %914 = vdwg.mxu0
      %915 = vmatpush.bf16.msra.mxu0 %v717
      %916 = vmatpush.bf16.msra.mxu0 %v715
      %917 = vmatpush.bf16.msra.mxu0 %v713
      %918 = vmatpush.bf16.msra.mxu0 %v711
      %919 = vmatpush.bf16.msra.mxu0 %v709
      %920 = vmatpush.bf16.msra.mxu0 %v707
      %921 = vmatpush.bf16.msra.mxu0 %v705
      %922 = vmatpush.bf16.msra.mxu0 %v703
      %923 = vmatmul.bf16.gmra.mxu0 %v397
      %v924 = vpop.f32.mrf.mxu0
      %v925 = vadd.f32 %v912, %v924
      %v926 = vpop.f32.mrf.mxu0
      %927 = vdwg.mxu0
      %v928 = vmax.f32 %v860, %v925
      %v929 = vld [vmem:[%s386 + $0x1] sm:$0x7f]
      %v930 = vld [vmem:[%s388 + $0x1] sm:$0x7f]
      %v931 = vpack.c.bf16 %v929, %v929
      %v932 = vpack.c.bf16 %v930, %v930
      %933 = vmatpush.bf16.msra.mxu0 %v652
      %934 = vmatpush.bf16.msra.mxu0 %v650
      %935 = vmatpush.bf16.msra.mxu0 %v648
      %936 = vmatpush.bf16.msra.mxu0 %v646
      %937 = vmatpush.bf16.msra.mxu0 %v644
      %938 = vmatpush.bf16.msra.mxu0 %v642
      %939 = vmatpush.bf16.msra.mxu0 %v640
      %940 = vmatpush.bf16.msra.mxu0 %v638
      %941 = vmatmul.bf16.gmra.mxu0 %v395
      %v942 = vpop.f32.mrf.mxu0
      %v943 = vadd.f32 0.0, %v942
      %v944 = vpop.f32.mrf.mxu0
      %945 = vdwg.mxu0
      %946 = vmatpush.bf16.msra.mxu0 %v668
      %947 = vmatpush.bf16.msra.mxu0 %v666
      %948 = vmatpush.bf16.msra.mxu0 %v664
      %949 = vmatpush.bf16.msra.mxu0 %v662
      %950 = vmatpush.bf16.msra.mxu0 %v660
      %951 = vmatpush.bf16.msra.mxu0 %v658
      %952 = vmatpush.bf16.msra.mxu0 %v656
      %953 = vmatpush.bf16.msra.mxu0 %v654
      %954 = vmatmul.bf16.gmra.mxu0 %v396
      %v955 = vpop.f32.mrf.mxu0
      %v956 = vadd.f32 %v943, %v955
      %v957 = vpop.f32.mrf.mxu0
      %958 = vdwg.mxu0
      %959 = vmatpush.bf16.msra.mxu0 %v684
      %960 = vmatpush.bf16.msra.mxu0 %v682
      %961 = vmatpush.bf16.msra.mxu0 %v680
      %962 = vmatpush.bf16.msra.mxu0 %v678
      %963 = vmatpush.bf16.msra.mxu0 %v676
      %964 = vmatpush.bf16.msra.mxu0 %v674
      %965 = vmatpush.bf16.msra.mxu0 %v672
      %966 = vmatpush.bf16.msra.mxu0 %v670
      %967 = vmatmul.bf16.gmra.mxu0 %v397
      %v968 = vpop.f32.mrf.mxu0
      %v969 = vadd.f32 %v956, %v968
      %v970 = vpop.f32.mrf.mxu0
      %971 = vdwg.mxu0
      %972 = vmatpush.bf16.msra.mxu0 %v700
      %973 = vmatpush.bf16.msra.mxu0 %v698
      %974 = vmatpush.bf16.msra.mxu0 %v696
      %975 = vmatpush.bf16.msra.mxu0 %v694
      %976 = vmatpush.bf16.msra.mxu0 %v692
      %977 = vmatpush.bf16.msra.mxu0 %v690
      %978 = vmatpush.bf16.msra.mxu0 %v688
      %979 = vmatpush.bf16.msra.mxu0 %v686
      %980 = vmatmul.bf16.gmra.mxu0 %v931
      %v981 = vpop.f32.mrf.mxu0
      %v982 = vadd.f32 %v969, %v981
      %v983 = vpop.f32.mrf.mxu0
      %984 = vdwg.mxu0
      %985 = vmatpush.bf16.msra.mxu0 %v716
      %986 = vmatpush.bf16.msra.mxu0 %v714
      %987 = vmatpush.bf16.msra.mxu0 %v712
      %988 = vmatpush.bf16.msra.mxu0 %v710
      %989 = vmatpush.bf16.msra.mxu0 %v708
      %990 = vmatpush.bf16.msra.mxu0 %v706
      %991 = vmatpush.bf16.msra.mxu0 %v704
      %992 = vmatpush.bf16.msra.mxu0 %v702
      %993 = vmatmul.bf16.gmra.mxu0 %v932
      %v994 = vpop.f32.mrf.mxu0
      %v995 = vadd.f32 %v982, %v994
      %v996 = vpop.f32.mrf.mxu0
      %997 = vdwg.mxu0
      %998 = vmatpush.bf16.msra.mxu0 %v653
      %999 = vmatpush.bf16.msra.mxu0 %v651
      %1000 = vmatpush.bf16.msra.mxu0 %v649
      %1001 = vmatpush.bf16.msra.mxu0 %v647
      %1002 = vmatpush.bf16.msra.mxu0 %v645
      %1003 = vmatpush.bf16.msra.mxu0 %v643
      %1004 = vmatpush.bf16.msra.mxu0 %v641
      %1005 = vmatpush.bf16.msra.mxu0 %v639
      %1006 = vmatmul.bf16.gmra.mxu0 %v395
      %v1007 = vpop.f32.mrf.mxu0
      %v1008 = vadd.f32 0.0, %v1007
      %v1009 = vpop.f32.mrf.mxu0
      %1010 = vdwg.mxu0
      %1011 = vmatpush.bf16.msra.mxu0 %v669
      %1012 = vmatpush.bf16.msra.mxu0 %v667
      %1013 = vmatpush.bf16.msra.mxu0 %v665
      %1014 = vmatpush.bf16.msra.mxu0 %v663
      %1015 = vmatpush.bf16.msra.mxu0 %v661
      %1016 = vmatpush.bf16.msra.mxu0 %v659
      %1017 = vmatpush.bf16.msra.mxu0 %v657
      %1018 = vmatpush.bf16.msra.mxu0 %v655
      %1019 = vmatmul.bf16.gmra.mxu0 %v396
      %v1020 = vpop.f32.mrf.mxu0
      %v1021 = vadd.f32 %v1008, %v1020
      %v1022 = vpop.f32.mrf.mxu0
      %1023 = vdwg.mxu0
      %1024 = vmatpush.bf16.msra.mxu0 %v685
      %1025 = vmatpush.bf16.msra.mxu0 %v683
      %1026 = vmatpush.bf16.msra.mxu0 %v681
      %1027 = vmatpush.bf16.msra.mxu0 %v679
      %1028 = vmatpush.bf16.msra.mxu0 %v677
      %1029 = vmatpush.bf16.msra.mxu0 %v675
      %1030 = vmatpush.bf16.msra.mxu0 %v673
      %1031 = vmatpush.bf16.msra.mxu0 %v671
      %1032 = vmatmul.bf16.gmra.mxu0 %v397
      %v1033 = vpop.f32.mrf.mxu0
      %v1034 = vadd.f32 %v1021, %v1033
      %v1035 = vpop.f32.mrf.mxu0
      %1036 = vdwg.mxu0
      %1037 = vmatpush.bf16.msra.mxu0 %v701
      %1038 = vmatpush.bf16.msra.mxu0 %v699
      %1039 = vmatpush.bf16.msra.mxu0 %v697
      %1040 = vmatpush.bf16.msra.mxu0 %v695
      %1041 = vmatpush.bf16.msra.mxu0 %v693
      %1042 = vmatpush.bf16.msra.mxu0 %v691
      %1043 = vmatpush.bf16.msra.mxu0 %v689
      %1044 = vmatpush.bf16.msra.mxu0 %v687
      %1045 = vmatmul.bf16.gmra.mxu0 %v931
      %v1046 = vpop.f32.mrf.mxu0
      %v1047 = vadd.f32 %v1034, %v1046
      %v1048 = vpop.f32.mrf.mxu0
      %1049 = vdwg.mxu0
      %1050 = vmatpush.bf16.msra.mxu0 %v717
      %1051 = vmatpush.bf16.msra.mxu0 %v715
      %1052 = vmatpush.bf16.msra.mxu0 %v713
      %1053 = vmatpush.bf16.msra.mxu0 %v711
      %1054 = vmatpush.bf16.msra.mxu0 %v709
      %1055 = vmatpush.bf16.msra.mxu0 %v707
      %1056 = vmatpush.bf16.msra.mxu0 %v705
      %1057 = vmatpush.bf16.msra.mxu0 %v703
      %1058 = vmatmul.bf16.gmra.mxu0 %v932
      %v1059 = vpop.f32.mrf.mxu0
      %v1060 = vadd.f32 %v1047, %v1059
      %v1061 = vpop.f32.mrf.mxu0
      %1062 = vdwg.mxu0
      %v1063 = vmax.f32 %v995, %v1060
      %1064 = vmatpush.bf16.msra.mxu0 %v652
      %1065 = vmatpush.bf16.msra.mxu0 %v650
      %1066 = vmatpush.bf16.msra.mxu0 %v648
      %1067 = vmatpush.bf16.msra.mxu0 %v646
      %1068 = vmatpush.bf16.msra.mxu0 %v644
      %1069 = vmatpush.bf16.msra.mxu0 %v642
      %1070 = vmatpush.bf16.msra.mxu0 %v640
      %1071 = vmatpush.bf16.msra.mxu0 %v638
      %1072 = vmatmul.bf16.gmra.mxu0 %v394
      %v1073 = vpop.f32.mrf.mxu0
      %v1074 = vadd.f32 0.0, %v1073
      %v1075 = vpop.f32.mrf.mxu0
      %1076 = vdwg.mxu0
      %1077 = vmatpush.bf16.msra.mxu0 %v668
      %1078 = vmatpush.bf16.msra.mxu0 %v666
      %1079 = vmatpush.bf16.msra.mxu0 %v664
      %1080 = vmatpush.bf16.msra.mxu0 %v662
      %1081 = vmatpush.bf16.msra.mxu0 %v660
      %1082 = vmatpush.bf16.msra.mxu0 %v658
      %1083 = vmatpush.bf16.msra.mxu0 %v656
      %1084 = vmatpush.bf16.msra.mxu0 %v654
      %1085 = vmatmul.bf16.gmra.mxu0 %v395
      %v1086 = vpop.f32.mrf.mxu0
      %v1087 = vadd.f32 %v1074, %v1086
      %v1088 = vpop.f32.mrf.mxu0
      %1089 = vdwg.mxu0
      %1090 = vmatpush.bf16.msra.mxu0 %v684
      %1091 = vmatpush.bf16.msra.mxu0 %v682
      %1092 = vmatpush.bf16.msra.mxu0 %v680
      %1093 = vmatpush.bf16.msra.mxu0 %v678
      %1094 = vmatpush.bf16.msra.mxu0 %v676
      %1095 = vmatpush.bf16.msra.mxu0 %v674
      %1096 = vmatpush.bf16.msra.mxu0 %v672
      %1097 = vmatpush.bf16.msra.mxu0 %v670
      %1098 = vmatmul.bf16.gmra.mxu0 %v396
      %v1099 = vpop.f32.mrf.mxu0
      %v1100 = vadd.f32 %v1087, %v1099
      %v1101 = vpop.f32.mrf.mxu0
      %1102 = vdwg.mxu0
      %1103 = vmatpush.bf16.msra.mxu0 %v700
      %1104 = vmatpush.bf16.msra.mxu0 %v698
      %1105 = vmatpush.bf16.msra.mxu0 %v696
      %1106 = vmatpush.bf16.msra.mxu0 %v694
      %1107 = vmatpush.bf16.msra.mxu0 %v692
      %1108 = vmatpush.bf16.msra.mxu0 %v690
      %1109 = vmatpush.bf16.msra.mxu0 %v688
      %1110 = vmatpush.bf16.msra.mxu0 %v686
      %1111 = vmatmul.bf16.gmra.mxu0 %v397
      %v1112 = vpop.f32.mrf.mxu0
      %v1113 = vadd.f32 %v1100, %v1112
      %v1114 = vpop.f32.mrf.mxu0
      %1115 = vdwg.mxu0
      %1116 = vmatpush.bf16.msra.mxu0 %v716
      %1117 = vmatpush.bf16.msra.mxu0 %v714
      %1118 = vmatpush.bf16.msra.mxu0 %v712
      %1119 = vmatpush.bf16.msra.mxu0 %v710
      %1120 = vmatpush.bf16.msra.mxu0 %v708
      %1121 = vmatpush.bf16.msra.mxu0 %v706
      %1122 = vmatpush.bf16.msra.mxu0 %v704
      %1123 = vmatpush.bf16.msra.mxu0 %v702
      %1124 = vmatmul.bf16.gmra.mxu0 %v931
      %v1125 = vpop.f32.mrf.mxu0
      %v1126 = vadd.f32 %v1113, %v1125
      %v1127 = vpop.f32.mrf.mxu0
      %1128 = vdwg.mxu0
      %1129 = vmatpush.bf16.msra.mxu0 %v653
      %1130 = vmatpush.bf16.msra.mxu0 %v651
      %1131 = vmatpush.bf16.msra.mxu0 %v649
      %1132 = vmatpush.bf16.msra.mxu0 %v647
      %1133 = vmatpush.bf16.msra.mxu0 %v645
      %1134 = vmatpush.bf16.msra.mxu0 %v643
      %1135 = vmatpush.bf16.msra.mxu0 %v641
      %1136 = vmatpush.bf16.msra.mxu0 %v639
      %1137 = vmatmul.bf16.gmra.mxu0 %v394
      %v1138 = vpop.f32.mrf.mxu0
      %v1139 = vadd.f32 0.0, %v1138
      %v1140 = vpop.f32.mrf.mxu0
      %1141 = vdwg.mxu0
      %1142 = vmatpush.bf16.msra.mxu0 %v669
      %1143 = vmatpush.bf16.msra.mxu0 %v667
      %1144 = vmatpush.bf16.msra.mxu0 %v665
      %1145 = vmatpush.bf16.msra.mxu0 %v663
      %1146 = vmatpush.bf16.msra.mxu0 %v661
      %1147 = vmatpush.bf16.msra.mxu0 %v659
      %1148 = vmatpush.bf16.msra.mxu0 %v657
      %1149 = vmatpush.bf16.msra.mxu0 %v655
      %1150 = vmatmul.bf16.gmra.mxu0 %v395
      %v1151 = vpop.f32.mrf.mxu0
      %v1152 = vadd.f32 %v1139, %v1151
      %v1153 = vpop.f32.mrf.mxu0
      %1154 = vdwg.mxu0
      %1155 = vmatpush.bf16.msra.mxu0 %v685
      %1156 = vmatpush.bf16.msra.mxu0 %v683
      %1157 = vmatpush.bf16.msra.mxu0 %v681
      %1158 = vmatpush.bf16.msra.mxu0 %v679
      %1159 = vmatpush.bf16.msra.mxu0 %v677
      %1160 = vmatpush.bf16.msra.mxu0 %v675
      %1161 = vmatpush.bf16.msra.mxu0 %v673
      %1162 = vmatpush.bf16.msra.mxu0 %v671
      %1163 = vmatmul.bf16.gmra.mxu0 %v396
      %v1164 = vpop.f32.mrf.mxu0
      %v1165 = vadd.f32 %v1152, %v1164
      %v1166 = vpop.f32.mrf.mxu0
      %1167 = vdwg.mxu0
      %1168 = vmatpush.bf16.msra.mxu0 %v701
      %1169 = vmatpush.bf16.msra.mxu0 %v699
      %1170 = vmatpush.bf16.msra.mxu0 %v697
      %1171 = vmatpush.bf16.msra.mxu0 %v695
      %1172 = vmatpush.bf16.msra.mxu0 %v693
      %1173 = vmatpush.bf16.msra.mxu0 %v691
      %1174 = vmatpush.bf16.msra.mxu0 %v689
      %1175 = vmatpush.bf16.msra.mxu0 %v687
      %1176 = vmatmul.bf16.gmra.mxu0 %v397
      %v1177 = vpop.f32.mrf.mxu0
      %v1178 = vadd.f32 %v1165, %v1177
      %v1179 = vpop.f32.mrf.mxu0
      %1180 = vdwg.mxu0
      %1181 = vmatpush.bf16.msra.mxu0 %v717
      %1182 = vmatpush.bf16.msra.mxu0 %v715
      %1183 = vmatpush.bf16.msra.mxu0 %v713
      %1184 = vmatpush.bf16.msra.mxu0 %v711
      %1185 = vmatpush.bf16.msra.mxu0 %v709
      %1186 = vmatpush.bf16.msra.mxu0 %v707
      %1187 = vmatpush.bf16.msra.mxu0 %v705
      %1188 = vmatpush.bf16.msra.mxu0 %v703
      %1189 = vmatmul.bf16.gmra.mxu0 %v931
      %v1190 = vpop.f32.mrf.mxu0
      %v1191 = vadd.f32 %v1178, %v1190
      %v1192 = vpop.f32.mrf.mxu0
      %1193 = vdwg.mxu0
      %v1194 = vmax.f32 %v1126, %v1191
      %v1195 = vld [vmem:[%s390 + $0x1] sm:$0x7f]
      %v1196 = vpack.c.bf16 %v1195, %v1195
      %1197 = vmatpush.bf16.msra.mxu0 %v652
      %1198 = vmatpush.bf16.msra.mxu0 %v650
      %1199 = vmatpush.bf16.msra.mxu0 %v648
      %1200 = vmatpush.bf16.msra.mxu0 %v646
      %1201 = vmatpush.bf16.msra.mxu0 %v644
      %1202 = vmatpush.bf16.msra.mxu0 %v642
      %1203 = vmatpush.bf16.msra.mxu0 %v640
      %1204 = vmatpush.bf16.msra.mxu0 %v638
      %1205 = vmatmul.bf16.gmra.mxu0 %v396
      %v1206 = vpop.f32.mrf.mxu0
      %v1207 = vadd.f32 0.0, %v1206
      %v1208 = vpop.f32.mrf.mxu0
      %1209 = vdwg.mxu0
      %1210 = vmatpush.bf16.msra.mxu0 %v668
      %1211 = vmatpush.bf16.msra.mxu0 %v666
      %1212 = vmatpush.bf16.msra.mxu0 %v664
      %1213 = vmatpush.bf16.msra.mxu0 %v662
      %1214 = vmatpush.bf16.msra.mxu0 %v660
      %1215 = vmatpush.bf16.msra.mxu0 %v658
      %1216 = vmatpush.bf16.msra.mxu0 %v656
      %1217 = vmatpush.bf16.msra.mxu0 %v654
      %1218 = vmatmul.bf16.gmra.mxu0 %v397
      %v1219 = vpop.f32.mrf.mxu0
      %v1220 = vadd.f32 %v1207, %v1219
      %v1221 = vpop.f32.mrf.mxu0
      %1222 = vdwg.mxu0
      %1223 = vmatpush.bf16.msra.mxu0 %v684
      %1224 = vmatpush.bf16.msra.mxu0 %v682
      %1225 = vmatpush.bf16.msra.mxu0 %v680
      %1226 = vmatpush.bf16.msra.mxu0 %v678
      %1227 = vmatpush.bf16.msra.mxu0 %v676
      %1228 = vmatpush.bf16.msra.mxu0 %v674
      %1229 = vmatpush.bf16.msra.mxu0 %v672
      %1230 = vmatpush.bf16.msra.mxu0 %v670
      %1231 = vmatmul.bf16.gmra.mxu0 %v931
      %v1232 = vpop.f32.mrf.mxu0
      %v1233 = vadd.f32 %v1220, %v1232
      %v1234 = vpop.f32.mrf.mxu0
      %1235 = vdwg.mxu0
      %1236 = vmatpush.bf16.msra.mxu0 %v700
      %1237 = vmatpush.bf16.msra.mxu0 %v698
      %1238 = vmatpush.bf16.msra.mxu0 %v696
      %1239 = vmatpush.bf16.msra.mxu0 %v694
      %1240 = vmatpush.bf16.msra.mxu0 %v692
      %1241 = vmatpush.bf16.msra.mxu0 %v690
      %1242 = vmatpush.bf16.msra.mxu0 %v688
      %1243 = vmatpush.bf16.msra.mxu0 %v686
      %1244 = vmatmul.bf16.gmra.mxu0 %v932
      %v1245 = vpop.f32.mrf.mxu0
      %v1246 = vadd.f32 %v1233, %v1245
      %v1247 = vpop.f32.mrf.mxu0
      %1248 = vdwg.mxu0
      %1249 = vmatpush.bf16.msra.mxu0 %v716
      %1250 = vmatpush.bf16.msra.mxu0 %v714
      %1251 = vmatpush.bf16.msra.mxu0 %v712
      %1252 = vmatpush.bf16.msra.mxu0 %v710
      %1253 = vmatpush.bf16.msra.mxu0 %v708
      %1254 = vmatpush.bf16.msra.mxu0 %v706
      %1255 = vmatpush.bf16.msra.mxu0 %v704
      %1256 = vmatpush.bf16.msra.mxu0 %v702
      %1257 = vmatmul.bf16.gmra.mxu0 %v1196
      %v1258 = vpop.f32.mrf.mxu0
      %v1259 = vadd.f32 %v1246, %v1258
      %v1260 = vpop.f32.mrf.mxu0
      %1261 = vdwg.mxu0
      %1262 = vmatpush.bf16.msra.mxu0 %v653
      %1263 = vmatpush.bf16.msra.mxu0 %v651
      %1264 = vmatpush.bf16.msra.mxu0 %v649
      %1265 = vmatpush.bf16.msra.mxu0 %v647
      %1266 = vmatpush.bf16.msra.mxu0 %v645
      %1267 = vmatpush.bf16.msra.mxu0 %v643
      %1268 = vmatpush.bf16.msra.mxu0 %v641
      %1269 = vmatpush.bf16.msra.mxu0 %v639
      %1270 = vmatmul.bf16.gmra.mxu0 %v396
      %v1271 = vpop.f32.mrf.mxu0
      %v1272 = vadd.f32 0.0, %v1271
      %v1273 = vpop.f32.mrf.mxu0
      %1274 = vdwg.mxu0
      %1275 = vmatpush.bf16.msra.mxu0 %v669
      %1276 = vmatpush.bf16.msra.mxu0 %v667
      %1277 = vmatpush.bf16.msra.mxu0 %v665
      %1278 = vmatpush.bf16.msra.mxu0 %v663
      %1279 = vmatpush.bf16.msra.mxu0 %v661
      %1280 = vmatpush.bf16.msra.mxu0 %v659
      %1281 = vmatpush.bf16.msra.mxu0 %v657
      %1282 = vmatpush.bf16.msra.mxu0 %v655
      %1283 = vmatmul.bf16.gmra.mxu0 %v397
      %v1284 = vpop.f32.mrf.mxu0
      %v1285 = vadd.f32 %v1272, %v1284
      %v1286 = vpop.f32.mrf.mxu0
      %1287 = vdwg.mxu0
      %1288 = vmatpush.bf16.msra.mxu0 %v685
      %1289 = vmatpush.bf16.msra.mxu0 %v683
      %1290 = vmatpush.bf16.msra.mxu0 %v681
      %1291 = vmatpush.bf16.msra.mxu0 %v679
      %1292 = vmatpush.bf16.msra.mxu0 %v677
      %1293 = vmatpush.bf16.msra.mxu0 %v675
      %1294 = vmatpush.bf16.msra.mxu0 %v673
      %1295 = vmatpush.bf16.msra.mxu0 %v671
      %1296 = vmatmul.bf16.gmra.mxu0 %v931
      %v1297 = vpop.f32.mrf.mxu0
      %v1298 = vadd.f32 %v1285, %v1297
      %v1299 = vpop.f32.mrf.mxu0
      %1300 = vdwg.mxu0
      %1301 = vmatpush.bf16.msra.mxu0 %v701
      %1302 = vmatpush.bf16.msra.mxu0 %v699
      %1303 = vmatpush.bf16.msra.mxu0 %v697
      %1304 = vmatpush.bf16.msra.mxu0 %v695
      %1305 = vmatpush.bf16.msra.mxu0 %v693
      %1306 = vmatpush.bf16.msra.mxu0 %v691
      %1307 = vmatpush.bf16.msra.mxu0 %v689
      %1308 = vmatpush.bf16.msra.mxu0 %v687
      %1309 = vmatmul.bf16.gmra.mxu0 %v932
      %v1310 = vpop.f32.mrf.mxu0
      %v1311 = vadd.f32 %v1298, %v1310
      %v1312 = vpop.f32.mrf.mxu0
      %1313 = vdwg.mxu0
      %1314 = vmatpush.bf16.msra.mxu0 %v717
      %1315 = vmatpush.bf16.msra.mxu0 %v715
      %1316 = vmatpush.bf16.msra.mxu0 %v713
      %1317 = vmatpush.bf16.msra.mxu0 %v711
      %1318 = vmatpush.bf16.msra.mxu0 %v709
      %1319 = vmatpush.bf16.msra.mxu0 %v707
      %1320 = vmatpush.bf16.msra.mxu0 %v705
      %1321 = vmatpush.bf16.msra.mxu0 %v703
      %1322 = vmatmul.bf16.gmra.mxu0 %v1196
      %v1323 = vpop.f32.mrf.mxu0
      %v1324 = vadd.f32 %v1311, %v1323
      %v1325 = vpop.f32.mrf.mxu0
      %1326 = vdwg.mxu0
      %v1327 = vmax.f32 %v1259, %v1324
      %v1328 = vmax.f32 %v928, %v1194
      %v1330 = vperm.slane %v383, 0
      %v1332 = vadd.f32 %v1328, %v1330
      %v1333 = vmax.f32 %v1332, 0.0
      %v1334 = vmax.f32 %v1063, %v1327
      %v1335 = vadd.f32 %v1334, %v1330
      %v1336 = vmax.f32 %v1335, 0.0
      %v1338 = vrot.slane %v1333, 1
      %v1341 = vrot.slane %v1336, 1
      %v1343 = vrot.slane %v1333, 2
      %v1345 = vpack.c.bf16 %v1333, %v1333
      %v1346 = vpack.c.bf16 %v1336, %v1336
      %v1347 = vpack.c.bf16 %v1338, %v1338
      %v1348 = vpack.c.bf16 %v1341, %v1341
      %v1349 = vpack.c.bf16 %v1343, %v1343
      %v1430 = vunpack.c.l.b16 %v303
      %v1431 = vunpack.c.h.b16 %v303
      %v1432 = vunpack.c.l.b16 %v304
      %v1433 = vunpack.c.h.b16 %v304
      %v1434 = vunpack.c.l.b16 %v305
      %v1435 = vunpack.c.h.b16 %v305
      %v1436 = vunpack.c.l.b16 %v306
      %v1437 = vunpack.c.h.b16 %v306
      %v1438 = vunpack.c.l.b16 %v307
      %v1439 = vunpack.c.h.b16 %v307
      %v1440 = vunpack.c.l.b16 %v308
      %v1441 = vunpack.c.h.b16 %v308
      %v1442 = vunpack.c.l.b16 %v309
      %v1443 = vunpack.c.h.b16 %v309
      %v1444 = vunpack.c.l.b16 %v310
      %v1445 = vunpack.c.h.b16 %v310
      %v1446 = vunpack.c.l.b16 %v311
      %v1447 = vunpack.c.h.b16 %v311
      %v1448 = vunpack.c.l.b16 %v312
      %v1449 = vunpack.c.h.b16 %v312
      %v1450 = vunpack.c.l.b16 %v313
      %v1451 = vunpack.c.h.b16 %v313
      %v1452 = vunpack.c.l.b16 %v314
      %v1453 = vunpack.c.h.b16 %v314
      %v1454 = vunpack.c.l.b16 %v315
      %v1455 = vunpack.c.h.b16 %v315
      %v1456 = vunpack.c.l.b16 %v316
      %v1457 = vunpack.c.h.b16 %v316
      %v1458 = vunpack.c.l.b16 %v317
      %v1459 = vunpack.c.h.b16 %v317
      %v1460 = vunpack.c.l.b16 %v318
      %v1461 = vunpack.c.h.b16 %v318
      %v1462 = vunpack.c.l.b16 %v319
      %v1463 = vunpack.c.h.b16 %v319
      %v1464 = vunpack.c.l.b16 %v320
      %v1465 = vunpack.c.h.b16 %v320
      %v1466 = vunpack.c.l.b16 %v321
      %v1467 = vunpack.c.h.b16 %v321
      %v1468 = vunpack.c.l.b16 %v322
      %v1469 = vunpack.c.h.b16 %v322
      %v1470 = vunpack.c.l.b16 %v323
      %v1471 = vunpack.c.h.b16 %v323
      %v1472 = vunpack.c.l.b16 %v324
      %v1473 = vunpack.c.h.b16 %v324
      %v1474 = vunpack.c.l.b16 %v325
      %v1475 = vunpack.c.h.b16 %v325
      %v1476 = vunpack.c.l.b16 %v326
      %v1477 = vunpack.c.h.b16 %v326
      %v1478 = vunpack.c.l.b16 %v327
      %v1479 = vunpack.c.h.b16 %v327
      %v1480 = vunpack.c.l.b16 %v328
      %v1481 = vunpack.c.h.b16 %v328
      %v1482 = vunpack.c.l.b16 %v329
      %v1483 = vunpack.c.h.b16 %v329
      %v1484 = vunpack.c.l.b16 %v330
      %v1485 = vunpack.c.h.b16 %v330
      %v1486 = vunpack.c.l.b16 %v331
      %v1487 = vunpack.c.h.b16 %v331
      %v1488 = vunpack.c.l.b16 %v332
      %v1489 = vunpack.c.h.b16 %v332
      %v1490 = vunpack.c.l.b16 %v333
      %v1491 = vunpack.c.h.b16 %v333
      %v1492 = vunpack.c.l.b16 %v334
      %v1493 = vunpack.c.h.b16 %v334
      %v1494 = vunpack.c.l.b16 %v335
      %v1495 = vunpack.c.h.b16 %v335
      %v1496 = vunpack.c.l.b16 %v336
      %v1497 = vunpack.c.h.b16 %v336
      %v1498 = vunpack.c.l.b16 %v337
      %v1499 = vunpack.c.h.b16 %v337
      %v1500 = vunpack.c.l.b16 %v338
      %v1501 = vunpack.c.h.b16 %v338
      %v1502 = vunpack.c.l.b16 %v339
      %v1503 = vunpack.c.h.b16 %v339
      %v1504 = vunpack.c.l.b16 %v340
      %v1505 = vunpack.c.h.b16 %v340
      %v1506 = vunpack.c.l.b16 %v341
      %v1507 = vunpack.c.h.b16 %v341
      %v1508 = vunpack.c.l.b16 %v342
      %v1509 = vunpack.c.h.b16 %v342
      %v1510 = vunpack.c.l.b16 %v343
      %v1511 = vunpack.c.h.b16 %v343
      %v1512 = vunpack.c.l.b16 %v344
      %v1513 = vunpack.c.h.b16 %v344
      %v1514 = vunpack.c.l.b16 %v345
      %v1515 = vunpack.c.h.b16 %v345
      %v1516 = vunpack.c.l.b16 %v346
      %v1517 = vunpack.c.h.b16 %v346
      %v1518 = vunpack.c.l.b16 %v347
      %v1519 = vunpack.c.h.b16 %v347
      %v1520 = vunpack.c.l.b16 %v348
      %v1521 = vunpack.c.h.b16 %v348
      %v1522 = vunpack.c.l.b16 %v349
      %v1523 = vunpack.c.h.b16 %v349
      %v1524 = vunpack.c.l.b16 %v350
      %v1525 = vunpack.c.h.b16 %v350
      %v1526 = vunpack.c.l.b16 %v351
      %v1527 = vunpack.c.h.b16 %v351
      %v1528 = vunpack.c.l.b16 %v352
      %v1529 = vunpack.c.h.b16 %v352
      %v1530 = vunpack.c.l.b16 %v353
      %v1531 = vunpack.c.h.b16 %v353
      %v1532 = vunpack.c.l.b16 %v354
      %v1533 = vunpack.c.h.b16 %v354
      %v1534 = vunpack.c.l.b16 %v355
      %v1535 = vunpack.c.h.b16 %v355
      %v1536 = vunpack.c.l.b16 %v356
      %v1537 = vunpack.c.h.b16 %v356
      %v1538 = vunpack.c.l.b16 %v357
      %v1539 = vunpack.c.h.b16 %v357
      %v1540 = vunpack.c.l.b16 %v358
      %v1541 = vunpack.c.h.b16 %v358
      %v1542 = vunpack.c.l.b16 %v359
      %v1543 = vunpack.c.h.b16 %v359
      %v1544 = vunpack.c.l.b16 %v360
      %v1545 = vunpack.c.h.b16 %v360
      %v1546 = vunpack.c.l.b16 %v361
      %v1547 = vunpack.c.h.b16 %v361
      %v1548 = vunpack.c.l.b16 %v362
      %v1549 = vunpack.c.h.b16 %v362
      %v1550 = vunpack.c.l.b16 %v363
      %v1551 = vunpack.c.h.b16 %v363
      %v1552 = vunpack.c.l.b16 %v364
      %v1553 = vunpack.c.h.b16 %v364
      %v1554 = vunpack.c.l.b16 %v365
      %v1555 = vunpack.c.h.b16 %v365
      %v1556 = vunpack.c.l.b16 %v366
      %v1557 = vunpack.c.h.b16 %v366
      %v1558 = vunpack.c.l.b16 %v367
      %v1559 = vunpack.c.h.b16 %v367
      %v1560 = vunpack.c.l.b16 %v368
      %v1561 = vunpack.c.h.b16 %v368
      %v1562 = vunpack.c.l.b16 %v369
      %v1563 = vunpack.c.h.b16 %v369
      %v1564 = vunpack.c.l.b16 %v370
      %v1565 = vunpack.c.h.b16 %v370
      %v1566 = vunpack.c.l.b16 %v371
      %v1567 = vunpack.c.h.b16 %v371
      %v1568 = vunpack.c.l.b16 %v372
      %v1569 = vunpack.c.h.b16 %v372
      %v1570 = vunpack.c.l.b16 %v373
      %v1571 = vunpack.c.h.b16 %v373
      %v1572 = vunpack.c.l.b16 %v374
      %v1573 = vunpack.c.h.b16 %v374
      %v1574 = vunpack.c.l.b16 %v375
      %v1575 = vunpack.c.h.b16 %v375
      %v1576 = vunpack.c.l.b16 %v376
      %v1577 = vunpack.c.h.b16 %v376
      %v1578 = vunpack.c.l.b16 %v377
      %v1579 = vunpack.c.h.b16 %v377
      %v1580 = vunpack.c.l.b16 %v378
      %v1581 = vunpack.c.h.b16 %v378
      %v1582 = vunpack.c.l.b16 %v379
      %v1583 = vunpack.c.h.b16 %v379
      %v1584 = vunpack.c.l.b16 %v380
      %v1585 = vunpack.c.h.b16 %v380
      %v1586 = vunpack.c.l.b16 %v381
      %v1587 = vunpack.c.h.b16 %v381
      %v1588 = vunpack.c.l.b16 %v382
      %v1589 = vunpack.c.h.b16 %v382
      %v1590 = vpack.c.b16 %v1432, %v1430
      %v1591 = vpack.c.b16 %v1433, %v1431
      %v1592 = vpack.c.b16 %v1436, %v1434
      %v1593 = vpack.c.b16 %v1437, %v1435
      %v1594 = vpack.c.b16 %v1440, %v1438
      %v1595 = vpack.c.b16 %v1441, %v1439
      %v1596 = vpack.c.b16 %v1444, %v1442
      %v1597 = vpack.c.b16 %v1445, %v1443
      %v1598 = vpack.c.b16 %v1448, %v1446
      %v1599 = vpack.c.b16 %v1449, %v1447
      %v1600 = vpack.c.b16 %v1452, %v1450
      %v1601 = vpack.c.b16 %v1453, %v1451
      %v1602 = vpack.c.b16 %v1456, %v1454
      %v1603 = vpack.c.b16 %v1457, %v1455
      %v1604 = vpack.c.b16 %v1460, %v1458
      %v1605 = vpack.c.b16 %v1461, %v1459
      %v1606 = vpack.c.b16 %v1464, %v1462
      %v1607 = vpack.c.b16 %v1465, %v1463
      %v1608 = vpack.c.b16 %v1468, %v1466
      %v1609 = vpack.c.b16 %v1469, %v1467
      %v1610 = vpack.c.b16 %v1472, %v1470
      %v1611 = vpack.c.b16 %v1473, %v1471
      %v1612 = vpack.c.b16 %v1476, %v1474
      %v1613 = vpack.c.b16 %v1477, %v1475
      %v1614 = vpack.c.b16 %v1480, %v1478
      %v1615 = vpack.c.b16 %v1481, %v1479
      %v1616 = vpack.c.b16 %v1484, %v1482
      %v1617 = vpack.c.b16 %v1485, %v1483
      %v1618 = vpack.c.b16 %v1488, %v1486
      %v1619 = vpack.c.b16 %v1489, %v1487
      %v1620 = vpack.c.b16 %v1492, %v1490
      %v1621 = vpack.c.b16 %v1493, %v1491
      %v1622 = vpack.c.b16 %v1496, %v1494
      %v1623 = vpack.c.b16 %v1497, %v1495
      %v1624 = vpack.c.b16 %v1500, %v1498
      %v1625 = vpack.c.b16 %v1501, %v1499
      %v1626 = vpack.c.b16 %v1504, %v1502
      %v1627 = vpack.c.b16 %v1505, %v1503
      %v1628 = vpack.c.b16 %v1508, %v1506
      %v1629 = vpack.c.b16 %v1509, %v1507
      %v1630 = vpack.c.b16 %v1512, %v1510
      %v1631 = vpack.c.b16 %v1513, %v1511
      %v1632 = vpack.c.b16 %v1516, %v1514
      %v1633 = vpack.c.b16 %v1517, %v1515
      %v1634 = vpack.c.b16 %v1520, %v1518
      %v1635 = vpack.c.b16 %v1521, %v1519
      %v1636 = vpack.c.b16 %v1524, %v1522
      %v1637 = vpack.c.b16 %v1525, %v1523
      %v1638 = vpack.c.b16 %v1528, %v1526
      %v1639 = vpack.c.b16 %v1529, %v1527
      %v1640 = vpack.c.b16 %v1532, %v1530
      %v1641 = vpack.c.b16 %v1533, %v1531
      %v1642 = vpack.c.b16 %v1536, %v1534
      %v1643 = vpack.c.b16 %v1537, %v1535
      %v1644 = vpack.c.b16 %v1540, %v1538
      %v1645 = vpack.c.b16 %v1541, %v1539
      %v1646 = vpack.c.b16 %v1544, %v1542
      %v1647 = vpack.c.b16 %v1545, %v1543
      %v1648 = vpack.c.b16 %v1548, %v1546
      %v1649 = vpack.c.b16 %v1549, %v1547
      %v1650 = vpack.c.b16 %v1552, %v1550
      %v1651 = vpack.c.b16 %v1553, %v1551
      %v1652 = vpack.c.b16 %v1556, %v1554
      %v1653 = vpack.c.b16 %v1557, %v1555
      %v1654 = vpack.c.b16 %v1560, %v1558
      %v1655 = vpack.c.b16 %v1561, %v1559
      %v1656 = vpack.c.b16 %v1564, %v1562
      %v1657 = vpack.c.b16 %v1565, %v1563
      %v1658 = vpack.c.b16 %v1568, %v1566
      %v1659 = vpack.c.b16 %v1569, %v1567
      %v1660 = vpack.c.b16 %v1572, %v1570
      %v1661 = vpack.c.b16 %v1573, %v1571
      %v1662 = vpack.c.b16 %v1576, %v1574
      %v1663 = vpack.c.b16 %v1577, %v1575
      %v1664 = vpack.c.b16 %v1580, %v1578
      %v1665 = vpack.c.b16 %v1581, %v1579
      %v1666 = vpack.c.b16 %v1584, %v1582
      %v1667 = vpack.c.b16 %v1585, %v1583
      %v1668 = vpack.c.b16 %v1588, %v1586
      %v1669 = vpack.c.b16 %v1589, %v1587
      %1750 = vmatpush.bf16.msra.mxu0 %v1604
      %1751 = vmatpush.bf16.msra.mxu0 %v1602
      %1752 = vmatpush.bf16.msra.mxu0 %v1600
      %1753 = vmatpush.bf16.msra.mxu0 %v1598
      %1754 = vmatpush.bf16.msra.mxu0 %v1596
      %1755 = vmatpush.bf16.msra.mxu0 %v1594
      %1756 = vmatpush.bf16.msra.mxu0 %v1592
      %1757 = vmatpush.bf16.msra.mxu0 %v1590
      %1758 = vmatmul.bf16.gmra.mxu0 %v1345
      %v1759 = vpop.f32.mrf.mxu0
      %v1760 = vadd.f32 0.0, %v1759
      %v1761 = vpop.f32.mrf.mxu0
      %1762 = vdwg.mxu0
      %1763 = vmatpush.bf16.msra.mxu0 %v1620
      %1764 = vmatpush.bf16.msra.mxu0 %v1618
      %1765 = vmatpush.bf16.msra.mxu0 %v1616
      %1766 = vmatpush.bf16.msra.mxu0 %v1614
      %1767 = vmatpush.bf16.msra.mxu0 %v1612
      %1768 = vmatpush.bf16.msra.mxu0 %v1610
      %1769 = vmatpush.bf16.msra.mxu0 %v1608
      %1770 = vmatpush.bf16.msra.mxu0 %v1606
      %1771 = vmatmul.bf16.gmra.mxu0 %v1346
      %v1772 = vpop.f32.mrf.mxu0
      %v1773 = vadd.f32 %v1760, %v1772
      %v1774 = vpop.f32.mrf.mxu0
      %1775 = vdwg.mxu0
      %1776 = vmatpush.bf16.msra.mxu0 %v1636
      %1777 = vmatpush.bf16.msra.mxu0 %v1634
      %1778 = vmatpush.bf16.msra.mxu0 %v1632
      %1779 = vmatpush.bf16.msra.mxu0 %v1630
      %1780 = vmatpush.bf16.msra.mxu0 %v1628
      %1781 = vmatpush.bf16.msra.mxu0 %v1626
      %1782 = vmatpush.bf16.msra.mxu0 %v1624
      %1783 = vmatpush.bf16.msra.mxu0 %v1622
      %1784 = vmatmul.bf16.gmra.mxu0 %v1347
      %v1785 = vpop.f32.mrf.mxu0
      %v1786 = vadd.f32 %v1773, %v1785
      %v1787 = vpop.f32.mrf.mxu0
      %1788 = vdwg.mxu0
      %1789 = vmatpush.bf16.msra.mxu0 %v1652
      %1790 = vmatpush.bf16.msra.mxu0 %v1650
      %1791 = vmatpush.bf16.msra.mxu0 %v1648
      %1792 = vmatpush.bf16.msra.mxu0 %v1646
      %1793 = vmatpush.bf16.msra.mxu0 %v1644
      %1794 = vmatpush.bf16.msra.mxu0 %v1642
      %1795 = vmatpush.bf16.msra.mxu0 %v1640
      %1796 = vmatpush.bf16.msra.mxu0 %v1638
      %1797 = vmatmul.bf16.gmra.mxu0 %v1348
      %v1798 = vpop.f32.mrf.mxu0
      %v1799 = vadd.f32 %v1786, %v1798
      %v1800 = vpop.f32.mrf.mxu0
      %1801 = vdwg.mxu0
      %1802 = vmatpush.bf16.msra.mxu0 %v1668
      %1803 = vmatpush.bf16.msra.mxu0 %v1666
      %1804 = vmatpush.bf16.msra.mxu0 %v1664
      %1805 = vmatpush.bf16.msra.mxu0 %v1662
      %1806 = vmatpush.bf16.msra.mxu0 %v1660
      %1807 = vmatpush.bf16.msra.mxu0 %v1658
      %1808 = vmatpush.bf16.msra.mxu0 %v1656
      %1809 = vmatpush.bf16.msra.mxu0 %v1654
      %1810 = vmatmul.bf16.gmra.mxu0 %v1349
      %v1811 = vpop.f32.mrf.mxu0
      %v1812 = vadd.f32 %v1799, %v1811
      %v1813 = vpop.f32.mrf.mxu0
      %1814 = vdwg.mxu0
      %1815 = vmatpush.bf16.msra.mxu0 %v1605
      %1816 = vmatpush.bf16.msra.mxu0 %v1603
      %1817 = vmatpush.bf16.msra.mxu0 %v1601
      %1818 = vmatpush.bf16.msra.mxu0 %v1599
      %1819 = vmatpush.bf16.msra.mxu0 %v1597
      %1820 = vmatpush.bf16.msra.mxu0 %v1595
      %1821 = vmatpush.bf16.msra.mxu0 %v1593
      %1822 = vmatpush.bf16.msra.mxu0 %v1591
      %1823 = vmatmul.bf16.gmra.mxu0 %v1345
      %v1824 = vpop.f32.mrf.mxu0
      %v1825 = vadd.f32 0.0, %v1824
      %v1826 = vpop.f32.mrf.mxu0
      %1827 = vdwg.mxu0
      %1828 = vmatpush.bf16.msra.mxu0 %v1621
      %1829 = vmatpush.bf16.msra.mxu0 %v1619
      %1830 = vmatpush.bf16.msra.mxu0 %v1617
      %1831 = vmatpush.bf16.msra.mxu0 %v1615
      %1832 = vmatpush.bf16.msra.mxu0 %v1613
      %1833 = vmatpush.bf16.msra.mxu0 %v1611
      %1834 = vmatpush.bf16.msra.mxu0 %v1609
      %1835 = vmatpush.bf16.msra.mxu0 %v1607
      %1836 = vmatmul.bf16.gmra.mxu0 %v1346
      %v1837 = vpop.f32.mrf.mxu0
      %v1838 = vadd.f32 %v1825, %v1837
      %v1839 = vpop.f32.mrf.mxu0
      %1840 = vdwg.mxu0
      %1841 = vmatpush.bf16.msra.mxu0 %v1637
      %1842 = vmatpush.bf16.msra.mxu0 %v1635
      %1843 = vmatpush.bf16.msra.mxu0 %v1633
      %1844 = vmatpush.bf16.msra.mxu0 %v1631
      %1845 = vmatpush.bf16.msra.mxu0 %v1629
      %1846 = vmatpush.bf16.msra.mxu0 %v1627
      %1847 = vmatpush.bf16.msra.mxu0 %v1625
      %1848 = vmatpush.bf16.msra.mxu0 %v1623
      %1849 = vmatmul.bf16.gmra.mxu0 %v1347
      %v1850 = vpop.f32.mrf.mxu0
      %v1851 = vadd.f32 %v1838, %v1850
      %v1852 = vpop.f32.mrf.mxu0
      %1853 = vdwg.mxu0
      %1854 = vmatpush.bf16.msra.mxu0 %v1653
      %1855 = vmatpush.bf16.msra.mxu0 %v1651
      %1856 = vmatpush.bf16.msra.mxu0 %v1649
      %1857 = vmatpush.bf16.msra.mxu0 %v1647
      %1858 = vmatpush.bf16.msra.mxu0 %v1645
      %1859 = vmatpush.bf16.msra.mxu0 %v1643
      %1860 = vmatpush.bf16.msra.mxu0 %v1641
      %1861 = vmatpush.bf16.msra.mxu0 %v1639
      %1862 = vmatmul.bf16.gmra.mxu0 %v1348
      %v1863 = vpop.f32.mrf.mxu0
      %v1864 = vadd.f32 %v1851, %v1863
      %v1865 = vpop.f32.mrf.mxu0
      %1866 = vdwg.mxu0
      %1867 = vmatpush.bf16.msra.mxu0 %v1669
      %1868 = vmatpush.bf16.msra.mxu0 %v1667
      %1869 = vmatpush.bf16.msra.mxu0 %v1665
      %1870 = vmatpush.bf16.msra.mxu0 %v1663
      %1871 = vmatpush.bf16.msra.mxu0 %v1661
      %1872 = vmatpush.bf16.msra.mxu0 %v1659
      %1873 = vmatpush.bf16.msra.mxu0 %v1657
      %1874 = vmatpush.bf16.msra.mxu0 %v1655
      %1875 = vmatmul.bf16.gmra.mxu0 %v1349
      %v1876 = vpop.f32.mrf.mxu0
      %v1877 = vadd.f32 %v1864, %v1876
      %v1878 = vpop.f32.mrf.mxu0
      %1879 = vdwg.mxu0
      %v1880 = vmax.f32 %v1812, %v1877
      %v1881 = vrot.slane %v1336, 2
      %v1883 = vpack.c.bf16 %v1881, %v1881
      %1884 = vmatpush.bf16.msra.mxu0 %v1604
      %1885 = vmatpush.bf16.msra.mxu0 %v1602
      %1886 = vmatpush.bf16.msra.mxu0 %v1600
      %1887 = vmatpush.bf16.msra.mxu0 %v1598
      %1888 = vmatpush.bf16.msra.mxu0 %v1596
      %1889 = vmatpush.bf16.msra.mxu0 %v1594
      %1890 = vmatpush.bf16.msra.mxu0 %v1592
      %1891 = vmatpush.bf16.msra.mxu0 %v1590
      %1892 = vmatmul.bf16.gmra.mxu0 %v1346
      %v1893 = vpop.f32.mrf.mxu0
      %v1894 = vadd.f32 0.0, %v1893
      %v1895 = vpop.f32.mrf.mxu0
      %1896 = vdwg.mxu0
      %1897 = vmatpush.bf16.msra.mxu0 %v1620
      %1898 = vmatpush.bf16.msra.mxu0 %v1618
      %1899 = vmatpush.bf16.msra.mxu0 %v1616
      %1900 = vmatpush.bf16.msra.mxu0 %v1614
      %1901 = vmatpush.bf16.msra.mxu0 %v1612
      %1902 = vmatpush.bf16.msra.mxu0 %v1610
      %1903 = vmatpush.bf16.msra.mxu0 %v1608
      %1904 = vmatpush.bf16.msra.mxu0 %v1606
      %1905 = vmatmul.bf16.gmra.mxu0 %v1347
      %v1906 = vpop.f32.mrf.mxu0
      %v1907 = vadd.f32 %v1894, %v1906
      %v1908 = vpop.f32.mrf.mxu0
      %1909 = vdwg.mxu0
      %1910 = vmatpush.bf16.msra.mxu0 %v1636
      %1911 = vmatpush.bf16.msra.mxu0 %v1634
      %1912 = vmatpush.bf16.msra.mxu0 %v1632
      %1913 = vmatpush.bf16.msra.mxu0 %v1630
      %1914 = vmatpush.bf16.msra.mxu0 %v1628
      %1915 = vmatpush.bf16.msra.mxu0 %v1626
      %1916 = vmatpush.bf16.msra.mxu0 %v1624
      %1917 = vmatpush.bf16.msra.mxu0 %v1622
      %1918 = vmatmul.bf16.gmra.mxu0 %v1348
      %v1919 = vpop.f32.mrf.mxu0
      %v1920 = vadd.f32 %v1907, %v1919
      %v1921 = vpop.f32.mrf.mxu0
      %1922 = vdwg.mxu0
      %1923 = vmatpush.bf16.msra.mxu0 %v1652
      %1924 = vmatpush.bf16.msra.mxu0 %v1650
      %1925 = vmatpush.bf16.msra.mxu0 %v1648
      %1926 = vmatpush.bf16.msra.mxu0 %v1646
      %1927 = vmatpush.bf16.msra.mxu0 %v1644
      %1928 = vmatpush.bf16.msra.mxu0 %v1642
      %1929 = vmatpush.bf16.msra.mxu0 %v1640
      %1930 = vmatpush.bf16.msra.mxu0 %v1638
      %1931 = vmatmul.bf16.gmra.mxu0 %v1349
      %v1932 = vpop.f32.mrf.mxu0
      %v1933 = vadd.f32 %v1920, %v1932
      %v1934 = vpop.f32.mrf.mxu0
      %1935 = vdwg.mxu0
      %1936 = vmatpush.bf16.msra.mxu0 %v1668
      %1937 = vmatpush.bf16.msra.mxu0 %v1666
      %1938 = vmatpush.bf16.msra.mxu0 %v1664
      %1939 = vmatpush.bf16.msra.mxu0 %v1662
      %1940 = vmatpush.bf16.msra.mxu0 %v1660
      %1941 = vmatpush.bf16.msra.mxu0 %v1658
      %1942 = vmatpush.bf16.msra.mxu0 %v1656
      %1943 = vmatpush.bf16.msra.mxu0 %v1654
      %1944 = vmatmul.bf16.gmra.mxu0 %v1883
      %v1945 = vpop.f32.mrf.mxu0
      %v1946 = vadd.f32 %v1933, %v1945
      %v1947 = vpop.f32.mrf.mxu0
      %1948 = vdwg.mxu0
      %1949 = vmatpush.bf16.msra.mxu0 %v1605
      %1950 = vmatpush.bf16.msra.mxu0 %v1603
      %1951 = vmatpush.bf16.msra.mxu0 %v1601
      %1952 = vmatpush.bf16.msra.mxu0 %v1599
      %1953 = vmatpush.bf16.msra.mxu0 %v1597
      %1954 = vmatpush.bf16.msra.mxu0 %v1595
      %1955 = vmatpush.bf16.msra.mxu0 %v1593
      %1956 = vmatpush.bf16.msra.mxu0 %v1591
      %1957 = vmatmul.bf16.gmra.mxu0 %v1346
      %v1958 = vpop.f32.mrf.mxu0
      %v1959 = vadd.f32 0.0, %v1958
      %v1960 = vpop.f32.mrf.mxu0
      %1961 = vdwg.mxu0
      %1962 = vmatpush.bf16.msra.mxu0 %v1621
      %1963 = vmatpush.bf16.msra.mxu0 %v1619
      %1964 = vmatpush.bf16.msra.mxu0 %v1617
      %1965 = vmatpush.bf16.msra.mxu0 %v1615
      %1966 = vmatpush.bf16.msra.mxu0 %v1613
      %1967 = vmatpush.bf16.msra.mxu0 %v1611
      %1968 = vmatpush.bf16.msra.mxu0 %v1609
      %1969 = vmatpush.bf16.msra.mxu0 %v1607
      %1970 = vmatmul.bf16.gmra.mxu0 %v1347
      %v1971 = vpop.f32.mrf.mxu0
      %v1972 = vadd.f32 %v1959, %v1971
      %v1973 = vpop.f32.mrf.mxu0
      %1974 = vdwg.mxu0
      %1975 = vmatpush.bf16.msra.mxu0 %v1637
      %1976 = vmatpush.bf16.msra.mxu0 %v1635
      %1977 = vmatpush.bf16.msra.mxu0 %v1633
      %1978 = vmatpush.bf16.msra.mxu0 %v1631
      %1979 = vmatpush.bf16.msra.mxu0 %v1629
      %1980 = vmatpush.bf16.msra.mxu0 %v1627
      %1981 = vmatpush.bf16.msra.mxu0 %v1625
      %1982 = vmatpush.bf16.msra.mxu0 %v1623
      %1983 = vmatmul.bf16.gmra.mxu0 %v1348
      %v1984 = vpop.f32.mrf.mxu0
      %v1985 = vadd.f32 %v1972, %v1984
      %v1986 = vpop.f32.mrf.mxu0
      %1987 = vdwg.mxu0
      %1988 = vmatpush.bf16.msra.mxu0 %v1653
      %1989 = vmatpush.bf16.msra.mxu0 %v1651
      %1990 = vmatpush.bf16.msra.mxu0 %v1649
      %1991 = vmatpush.bf16.msra.mxu0 %v1647
      %1992 = vmatpush.bf16.msra.mxu0 %v1645
      %1993 = vmatpush.bf16.msra.mxu0 %v1643
      %1994 = vmatpush.bf16.msra.mxu0 %v1641
      %1995 = vmatpush.bf16.msra.mxu0 %v1639
      %1996 = vmatmul.bf16.gmra.mxu0 %v1349
      %v1997 = vpop.f32.mrf.mxu0
      %v1998 = vadd.f32 %v1985, %v1997
      %v1999 = vpop.f32.mrf.mxu0
      %2000 = vdwg.mxu0
      %2001 = vmatpush.bf16.msra.mxu0 %v1669
      %2002 = vmatpush.bf16.msra.mxu0 %v1667
      %2003 = vmatpush.bf16.msra.mxu0 %v1665
      %2004 = vmatpush.bf16.msra.mxu0 %v1663
      %2005 = vmatpush.bf16.msra.mxu0 %v1661
      %2006 = vmatpush.bf16.msra.mxu0 %v1659
      %2007 = vmatpush.bf16.msra.mxu0 %v1657
      %2008 = vmatpush.bf16.msra.mxu0 %v1655
      %2009 = vmatmul.bf16.gmra.mxu0 %v1883
      %v2010 = vpop.f32.mrf.mxu0
      %v2011 = vadd.f32 %v1998, %v2010
      %v2012 = vpop.f32.mrf.mxu0
      %2013 = vdwg.mxu0
      %v2014 = vmax.f32 %v1946, %v2011
      %v2015 = vmax.f32 %v1880, %v2014
      %v2017 = vperm.slane %v384, 0
      %v2019 = vadd.f32 %v2015, %v2017
      %v2020 = vmax.f32 %v2019, 0.0
      %2021 = vst [vmem:[%s222] sm:$0x1f] %v2020
      %p2022 = scmp.lt.s32.totalorder %s16, 1
      %s2023 = scalar_select %p2022, %s16, 1
      %s2024 = smul.addr %s2023, 8
      %s2025 = scalar_lea.vmem %s5, %s2024
      // Predicated region
      $region41: #{feature_block.1} parent=39 // pred_check
        %p2026 = pneg %p144
      $region42: #{feature_block.1} parent=39 // pred_check_branch
        %2028 = sbr.rel (%p2026) target = $region44
      $region43: #{feature_block.1} parent=39 // pred_region
        _
      $region44: #{feature_block.1} parent=39 // pred_fallthru
        _
    $region40: #{feature_block.1} parent=5 // pred_fallthru
      _
    %p2029 = scmp.le.s32.totalorder 2, %s11
    // Predicated region
    $region45: #{feature_block.1} parent=5 // pred_check
      %p2030 = pneg %p2029
    $region46: #{feature_block.1} parent=5 // pred_check_branch
      %2032 = sbr.rel (%p2030) target = $region48
    $region47: #{feature_block.1} parent=5 // pred_region
      %s2033 = ssub.s32 %s11, 2
      // Predicated region
      $region49: #{feature_block.1} parent=47 // pred_check
        %p2034 = pneg %p150
      $region50: #{feature_block.1} parent=47 // pred_check_branch
        %2036 = sbr.rel (%p2034) target = $region52
      $region51: #{feature_block.1} parent=47 // pred_region
        %p2037 = scmp.lt.s32.totalorder %s17, 1
        %s2038 = scalar_select %p2037, %s17, 1
        %s2039 = smul.addr %s2038, 8
        %s2040 = scalar_lea.vmem %s5, %s2039
      $region52: #{feature_block.1} parent=47 // pred_fallthru
        _
    $region48: #{feature_block.1} parent=5 // pred_fallthru
      _
  $region6: #{feature_block.1} parent=0 // loop_footer
    %s15 = sadd.s32 1, %s11
  $region7: #{feature_block.1} parent=0 // loop_footer_branch
    %10 = sbr.rel target = $region3
  $region8: #{feature_block.1} parent=0 // loop_exit
    _

</llo_original>
